<compile_context>
chip_gen: v5e
topology: v5e:2x2
jax: 0.10.0
libtpu: 0.0.40
codegen_flags: <defaults>
</compile_context>

<pallas_src>
import math

import jax
import jax.numpy as jnp
from jax import lax
from jax.experimental import pallas as pl
from jax.experimental.pallas import tpu as pltpu

EPS = 1e-12


def _round_up(x, m):
    return (x + m - 1) // m * m


# --------------------------------------------------------------------------
# Kernel A: power iteration -> u, v, and inv_sigma (SMEM scalar).
# --------------------------------------------------------------------------
def _make_spectral_sigma_kernel(power_iterations):
    def kernel(w_ref, u_ref, v_ref, sig_ref, u_out_ref, v_out_ref):
        w = w_ref[...].astype(jnp.float32)       # (Cout, Wf)
        u = u_ref[...].astype(jnp.float32)       # (1, Cout)
        v = v_ref[...].astype(jnp.float32)       # (1, Wf)
        for _ in range(power_iterations):
            # v = l2normalize(W^T u): multiply-by-reciprocal, not divide.
            wtu = jnp.dot(u, w, preferred_element_type=jnp.float32)          # (1, Wf)
            v = wtu * (1.0 / (jnp.sqrt(jnp.sum(wtu * wtu)) + EPS))
            # u = l2normalize(W v): contract matching last dims -> no transpose.
            wv = lax.dot_general(v, w, (((1,), (1,)), ((), ())),
                                 preferred_element_type=jnp.float32)         # (1, Cout)
            u = wv * (1.0 / (jnp.sqrt(jnp.sum(wv * wv)) + EPS))
        # sigma = u . (W v); recomputed so power_iterations=0 matches the
        # module's eval branch (_noupdate_u_v) too.
        wv = lax.dot_general(v, w, (((1,), (1,)), ((), ())),
                             preferred_element_type=jnp.float32)             # (1, Cout)
        sigma = jnp.sum(u * wv)
        # No epsilon here by design: matches PyTorch's `w / sigma`.
        sig_ref[0, 0] = 1.0 / sigma
        u_out_ref[...] = u.astype(u_out_ref.dtype)
        v_out_ref[...] = v.astype(v_out_ref.dtype)
    return kernel


def spectral_sigma(w_mat, u, v, power_iterations=1):
    Cout, Wf = w_mat.shape
    return pl.pallas_call(
        _make_spectral_sigma_kernel(power_iterations),
        out_shape=(jax.ShapeDtypeStruct((1, 1), jnp.float32),     # inv_sigma
                   jax.ShapeDtypeStruct((1, Cout), u.dtype),
                   jax.ShapeDtypeStruct((1, Wf), v.dtype)),
        in_specs=[pl.BlockSpec(memory_space=pltpu.MemorySpace.VMEM)] * 3,
        out_specs=(pl.BlockSpec(memory_space=pltpu.MemorySpace.SMEM),
                   pl.BlockSpec(memory_space=pltpu.MemorySpace.VMEM),
                   pl.BlockSpec(memory_space=pltpu.MemorySpace.VMEM)),
    )(w_mat, u, v)


# --------------------------------------------------------------------------
# Kernel B: fused direct conv, output-channel-major, row-tiled, tap-folded.
# --------------------------------------------------------------------------
def _make_conv_kernel(KH, KW, TH, Wo, Cin, stride, fold_taps, scale_weights):
    Kf = KH * KW * Cin

    def _tap(x_ref, row0, kh, kw):
        # (TH, Wo, Cin) tap window.  Unit-stride slices when stride == 1.
        if stride == 1:
            p = x_ref[0, pl.ds(row0 + kh, TH), pl.ds(kw, Wo), :]
        else:
            # TODO(synk): pre-split x into stride x stride phases
            # (space-to-depth) in the wrapper so these become unit-stride.
            p = x_ref[0, pl.ds(row0 + kh, TH, stride), pl.ds(kw, Wo, stride), :]
        # Free collapse when Wo % 8 == 0 (second-minor stays 8-aligned).
        return p.reshape(TH * Wo, Cin)

    def kernel(sig_ref, x_ref, w_ref, b_ref, o_ref):
        inv_sigma = sig_ref[0, 0]                       # scalar from SMEM
        r = pl.program_id(1)                            # output-row tile index
        row0 = pl.multiple_of(r * (TH * stride), TH * stride)

        if fold_taps:
            # Per-row-strip im2col in VMEM: one MXU pass, K = KH*KW*Cin.
            parts = [_tap(x_ref, row0, kh, kw)
                     for kh in range(KH) for kw in range(KW)]
            col = jnp.concatenate(parts, axis=-1)       # (TH*Wo, KH*KW*Cin)
            wk = w_ref[...]                             # (Cout_p, Kf)
            if scale_weights:                           # f32 path: scale tiny W once
                wk = wk * inv_sigma
            acc = lax.dot_general(wk, col, (((1,), (1,)), ((), ())),
                                  preferred_element_type=jnp.float32)
        else:
            # Per-tap path (Cin already fills the MXU contraction dim).
            w_all = w_ref[...]                          # (KH*KW, Cout_p, Cin)
            if scale_weights:
                w_all = w_all * inv_sigma
            acc = None
            for kh in range(KH):
                for kw in range(KW):
                    patch = _tap(x_ref, row0, kh, kw)                # (TH*Wo, Cin)
                    wk = w_all[kh * KW + kw]                         # (Cout_p, Cin)
                    part = lax.dot_general(wk, patch, (((1,), (1,)), ((), ())),
                                           preferred_element_type=jnp.float32)
                    acc = part if acc is None else acc + part

        if not scale_weights:         # bf16 operands: keep scale on the f32 acc
            acc = acc * inv_sigma
        out = acc + b_ref[...]        # (Cout_p, 1) broadcast over lanes
        o_ref[0] = out.astype(o_ref.dtype)              # (Cout_p, TH*Wo)

    return kernel


def _pick_row_tile(Ho, Wo, target_positions=2048):
    """Largest TH dividing Ho with (TH*Wo) % 128 == 0 and TH*Wo <= target;
    the smallest valid tile if none fit under target; Ho if no valid TH."""
    best = None
    for TH in range(1, Ho + 1):
        if Ho % TH or (TH * Wo) % 128:
            continue
        if TH * Wo <= target_positions or best is None:
            best = TH
        if TH * Wo > target_positions:
            break
    return best if best is not None else Ho


def conv2d_spectral(x, w_bar, bias, u, v, *, stride=1, padding=1,
                    power_iterations=1, matmul_dtype=jnp.bfloat16,
                    row_tile=None, fold_taps=None):
    """SpectralNorm(Conv2d).forward (training branch: one power iteration).

    x: (N, Cin, H, W) NCHW; w_bar: (Cout, Cin, KH, KW) OIHW; bias: (Cout,)
    u: (1, Cout); v: (1, Cin*KH*KW).  Returns (y_NCHW, u_new, v_new).
    """
    out_dtype = x.dtype
    N, Cin, H, W = x.shape
    Cout, Cin_w, KH, KW = w_bar.shape
    assert Cin == Cin_w
    Wf = Cin * KH * KW
    Kf = KH * KW * Cin
    Ho = (H + 2 * padding - KH) // stride + 1
    Wo = (W + 2 * padding - KW) // stride + 1
    Hp, Wp = H + 2 * padding, W + 2 * padding

    if fold_taps is None:
        fold_taps = Cin < 128          # per-tap K=Cin already fills the MXU otherwise
    if row_tile is None:
        row_tile = _pick_row_tile(Ho, Wo)
    TH = row_tile
    assert Ho % TH == 0 and (TH == Ho or (TH * Wo) % 128 == 0), \
        "row_tile must divide Ho and give a 128-aligned (or full) lane dim"
    n_rt = Ho // TH

    # --- Kernel A: u/v update + 1/sigma (normalized W never hits HBM) ---
    w_mat = w_bar.reshape(Cout, Wf)
    inv_sigma, u_new, v_new = spectral_sigma(w_mat, u, v, power_iterations)

    # --- conv operands: Cout padded to a multiple of 8 only (sublane axis) ---
    Cout_p = _round_up(Cout, 8)
    if fold_taps:
        # (Cout_p, KH*KW*Cin) with (kh, kw, cin) ordering matching the in-kernel
        # concat of taps.
        w_packed = jnp.transpose(w_bar, (0, 2, 3, 1)).reshape(Cout, Kf)
        w_packed = jnp.pad(w_packed, ((0, Cout_p - Cout), (0, 0)))
    else:
        w_packed = jnp.transpose(w_bar, (2, 3, 0, 1)).reshape(KH * KW, Cout, Cin)
        w_packed = jnp.pad(w_packed, ((0, 0), (0, Cout_p - Cout), (0, 0)))
    b2 = jnp.pad(bias.astype(jnp.float32), (0, Cout_p - Cout)).reshape(Cout_p, 1)

    # Padded NHWC slab in one wrapper expression (pad + layout change).
    # TODO(synk): pl.ANY + in-kernel halo DMA for large images (see header).
    xp = jnp.transpose(
        jnp.pad(x, ((0, 0), (0, 0), (padding, padding), (padding, padding))),
        (0, 2, 3, 1))                                            # (N, Hp, Wp, Cin)

    if matmul_dtype is not None and matmul_dtype != x.dtype:
        xp = xp.astype(matmul_dtype)                # halves HBM/VMEM traffic (bf16)
        w_packed = w_packed.astype(matmul_dtype)
    scale_weights = (w_packed.dtype == jnp.float32)  # fold 1/sigma into W (f32 path)

    # --- VMEM budget (crude (8,128)-padded estimate) and cost estimate ---
    isz = jnp.dtype(xp.dtype).itemsize
    osz = jnp.dtype(out_dtype).itemsize

    def _tile_bytes(shape, itemsize):
        s = list(shape)
        s[-1] = _round_up(s[-1], 128)
        if len(s) >= 2:
            s[-2] = _round_up(s[-2], 8)
        return math.prod(s) * itemsize

    est = (2 * (_tile_bytes((Hp, Wp, Cin), isz) + _tile_bytes(w_packed.shape, isz))
           + 2 * _tile_bytes((Cout_p, TH * Wo), osz)
           + (_tile_bytes((TH * Wo, Kf), isz) if fold_taps else 0)
           + _tile_bytes((Cout_p, TH * Wo), 4)
           + (1 << 20))
    # <= 48 MiB so the same build fits v7x's 64 MiB physical VMEM; raise toward
    # ~96 MiB on v5e/v6e (128 MiB) when using larger row tiles.
    vmem_limit = int(min(max(4 * est, 32 * 2 ** 20), 48 * 2 ** 20))

    cost = pl.CostEstimate(
        flops=2 * N * Ho * Wo * Cout * Cin * KH * KW,
        transcendentals=0,
        bytes_accessed=int(xp.size * isz + w_packed.size * isz
                           + N * Cout_p * Ho * Wo * osz))

    if fold_taps:
        w_spec = pl.BlockSpec((Cout_p, Kf), lambda n, r: (0, 0))
    else:
        w_spec = pl.BlockSpec((KH * KW, Cout_p, Cin), lambda n, r: (0, 0, 0))

    conv = pl.pallas_call(
        _make_conv_kernel(KH, KW, TH, Wo, Cin, stride, fold_taps, scale_weights),
        out_shape=jax.ShapeDtypeStruct((N, Cout_p, Ho * Wo), out_dtype),
        grid=(N, n_rt),
        in_specs=[
            pl.BlockSpec(memory_space=pltpu.MemorySpace.SMEM),            # 1/sigma
            # Whole padded image per batch element; block index ignores the row
            # axis so it stays resident across row tiles (no re-DMA).
            pl.BlockSpec((1, Hp, Wp, Cin), lambda n, r: (n, 0, 0, 0)),
            w_spec,                                                       # resident
            pl.BlockSpec((Cout_p, 1), lambda n, r: (0, 0)),               # resident
        ],
        out_specs=pl.BlockSpec((1, Cout_p, TH * Wo), lambda n, r: (n, 0, r)),
        compiler_params=pltpu.CompilerParams(
            dimension_semantics=("parallel", "parallel"),   # batch x row tiles
            vmem_limit_bytes=vmem_limit),
        cost_estimate=cost,
    )(inv_sigma, xp, w_packed, b2)

    # Output is already channel-major (NCHW): drop the (<8 row) sublane pad and
    # split Ho*Wo.  No NHWC->NCHW transpose, no 16x channel padding in HBM.
    y = conv[:, :Cout, :].reshape(N, Cout, Ho, Wo)
    return y, u_new, v_new


if __name__ == "__main__":
    key = jax.random.PRNGKey(0)
    kx, kw, kb, ku, kv = jax.random.split(key, 5)

    N, Cin, H, W = 2, 4, 16, 16
    Cout, KH, KW = 8, 3, 3
    Wf = Cin * KH * KW

    x = jax.random.normal(kx, (N, Cin, H, W), jnp.float32)
    w_bar = jax.random.normal(kw, (Cout, Cin, KH, KW), jnp.float32) * 0.1
    bias = jax.random.normal(kb, (Cout,), jnp.float32) * 0.01
    # _make_params: u, v ~ N(0,1) then l2-normalized (deterministic PRNGKey).
    u0 = jax.random.normal(ku, (1, Cout), jnp.float32)
    v0 = jax.random.normal(kv, (1, Wf), jnp.float32)
    u0 = u0 / (jnp.linalg.norm(u0) + EPS)
    v0 = v0 / (jnp.linalg.norm(v0) + EPS)

    fwd = jax.jit(conv2d_spectral,
                  static_argnames=("stride", "padding", "power_iterations",
                                   "matmul_dtype", "row_tile", "fold_taps"))

    # pure-JAX reference of SpectralNorm(Conv2d).forward (training mode)
    wm = w_bar.reshape(Cout, Wf)
    u_r = u0.reshape(-1)
    v_r = v0.reshape(-1)
    for _ in range(1):
        v_r = wm.T @ u_r
        v_r = v_r / (jnp.linalg.norm(v_r) + EPS)
        u_r = wm @ v_r
        u_r = u_r / (jnp.linalg.norm(u_r) + EPS)
    sigma = u_r @ (wm @ v_r)
    w_sn = w_bar / sigma
    y_ref = lax.conv_general_dilated(
        x, w_sn, window_strides=(1, 1), padding=((1, 1), (1, 1)),
        dimension_numbers=('NCHW', 'OIHW', 'NCHW')) + bias.reshape(1, Cout, 1, 1)

    # f32-operand path, tap-folded, two row tiles (exercises the row grid axis).
    y, u_new, v_new = fwd(x, w_bar, bias, u0, v0, stride=1, padding=1,
                          power_iterations=1, matmul_dtype=jnp.float32,
                          row_tile=8)
    jax.block_until_ready((y, u_new, v_new))
    assert jnp.allclose(y, y_ref, atol=1e-4, rtol=1e-4), \
        float(jnp.max(jnp.abs(y - y_ref)))
    assert jnp.allclose(u_new.reshape(-1), u_r, atol=1e-5)
    assert jnp.allclose(v_new.reshape(-1), v_r, atol=1e-5)

    # Per-tap MXU path (auto-selected when Cin >= 128); forced here at small Cin
    # just to exercise the branch.
    y_pt, _, _ = fwd(x, w_bar, bias, u0, v0, stride=1, padding=1,
                     power_iterations=1, matmul_dtype=jnp.float32,
                     row_tile=8, fold_taps=False)
    jax.block_until_ready(y_pt)
    assert jnp.allclose(y_pt, y_ref, atol=1e-4, rtol=1e-4), \
        float(jnp.max(jnp.abs(y_pt - y_ref)))

    # Default bf16-operand path (halved HBM/VMEM traffic, f32 accumulation).
    y_bf16, _, _ = fwd(x, w_bar, bias, u0, v0)
    jax.block_until_ready(y_bf16)
    assert jnp.allclose(y_bf16, y_ref, atol=1e-1, rtol=1e-1), \
        float(jnp.max(jnp.abs(y_bf16 - y_ref)))

    print("KERNEL_OK")
</pallas_src>

<mosaic_0001>
module attributes {stable_mosaic.version = 11 : i64} {
  func.func @kernel(%arg0: memref<8x36xf32, #tpu.memory_space<vmem>>, %arg1: memref<1x8xf32, #tpu.memory_space<vmem>>, %arg2: memref<1x36xf32, #tpu.memory_space<vmem>>, %arg3: memref<1x1xf32, #tpu.memory_space<smem>>, %arg4: memref<1x8xf32, #tpu.memory_space<vmem>>, %arg5: memref<1x36xf32, #tpu.memory_space<vmem>>) attributes {dimension_semantics = [], scalar_prefetch = 0 : i64, scratch_operands = 0 : i64, tpu.core_type = #tpu.core_type<tc>} {
    %c0 = arith.constant 0 : index
    %c0_0 = arith.constant 0 : index
    %0 = vector.load %arg0[%c0, %c0_0] : memref<8x36xf32, #tpu.memory_space<vmem>>, vector<8x36xf32>
    %c0_1 = arith.constant 0 : index
    %c0_2 = arith.constant 0 : index
    %1 = vector.load %arg1[%c0_1, %c0_2] : memref<1x8xf32, #tpu.memory_space<vmem>>, vector<1x8xf32>
    %cst = arith.constant dense<0.000000e+00> : vector<1x36xf32>
    %2 = tpu.matmul %1, %0, %cst {dimension_numbers = #tpu.dot_dimension_numbers<[1], [0], [0], [1], [0, 0, 1, 1], [], []>} : vector<1x8xf32>, vector<8x36xf32>, vector<1x36xf32> -> vector<1x36xf32>
    %3 = arith.mulf %2, %2 : vector<1x36xf32>
    %4 = vector.shape_cast %3 : vector<1x36xf32> to vector<1x1x36xf32>
    %cst_3 = arith.constant dense<0.000000e+00> : vector<1xf32>
    %5 = vector.multi_reduction <add>, %4, %cst_3 [1, 2] : vector<1x1x36xf32> to vector<1xf32>
    %6 = vector.shape_cast %5 : vector<1xf32> to vector<1x1x1xf32>
    %7 = vector.extract %6[0, 0, 0] : f32 from vector<1x1x1xf32>
    %8 = math.sqrt %7 : f32
    %cst_4 = arith.constant 9.99999996E-13 : f32
    %9 = arith.addf %8, %cst_4 : f32
    %cst_5 = arith.constant 1.000000e+00 : f32
    %10 = arith.divf %cst_5, %9 : f32
    %11 = vector.broadcast %10 : f32 to vector<1x36xf32>
    %12 = arith.mulf %2, %11 : vector<1x36xf32>
    %cst_6 = arith.constant dense<0.000000e+00> : vector<1x8xf32>
    %13 = tpu.matmul %12, %0, %cst_6 {dimension_numbers = #tpu.dot_dimension_numbers<[1], [1], [0], [0], [0, 0, 1, 0], [], []>} : vector<1x36xf32>, vector<8x36xf32>, vector<1x8xf32> -> vector<1x8xf32>
    %14 = arith.mulf %13, %13 : vector<1x8xf32>
    %15 = vector.shape_cast %14 : vector<1x8xf32> to vector<1x1x8xf32>
    %cst_7 = arith.constant dense<0.000000e+00> : vector<1xf32>
    %16 = vector.multi_reduction <add>, %15, %cst_7 [1, 2] : vector<1x1x8xf32> to vector<1xf32>
    %17 = vector.shape_cast %16 : vector<1xf32> to vector<1x1x1xf32>
    %18 = vector.extract %17[0, 0, 0] : f32 from vector<1x1x1xf32>
    %19 = math.sqrt %18 : f32
    %cst_8 = arith.constant 9.99999996E-13 : f32
    %20 = arith.addf %19, %cst_8 : f32
    %cst_9 = arith.constant 1.000000e+00 : f32
    %21 = arith.divf %cst_9, %20 : f32
    %22 = vector.broadcast %21 : f32 to vector<1x8xf32>
    %23 = arith.mulf %13, %22 : vector<1x8xf32>
    %cst_10 = arith.constant dense<0.000000e+00> : vector<1x8xf32>
    %24 = tpu.matmul %12, %0, %cst_10 {dimension_numbers = #tpu.dot_dimension_numbers<[1], [1], [0], [0], [0, 0, 1, 0], [], []>} : vector<1x36xf32>, vector<8x36xf32>, vector<1x8xf32> -> vector<1x8xf32>
    %25 = arith.mulf %23, %24 : vector<1x8xf32>
    %26 = vector.shape_cast %25 : vector<1x8xf32> to vector<1x1x8xf32>
    %cst_11 = arith.constant dense<0.000000e+00> : vector<1xf32>
    %27 = vector.multi_reduction <add>, %26, %cst_11 [1, 2] : vector<1x1x8xf32> to vector<1xf32>
    %28 = vector.shape_cast %27 : vector<1xf32> to vector<1x1x1xf32>
    %29 = vector.extract %28[0, 0, 0] : f32 from vector<1x1x1xf32>
    %cst_12 = arith.constant 1.000000e+00 : f32
    %30 = arith.divf %cst_12, %29 : f32
    %c0_13 = arith.constant 0 : index
    %c0_14 = arith.constant 0 : index
    %31 = memref.load %arg3[%c0_13, %c0_14] : memref<1x1xf32, #tpu.memory_space<smem>>
    memref.store %30, %arg3[%c0_13, %c0_14] : memref<1x1xf32, #tpu.memory_space<smem>>
    %c0_15 = arith.constant 0 : index
    %c0_16 = arith.constant 0 : index
    %32 = vector.load %arg4[%c0_15, %c0_16] : memref<1x8xf32, #tpu.memory_space<vmem>>, vector<1x8xf32>
    tpu.vector_store %arg4[%c0_15, %c0_16], %23 {strides = array<i32>} : memref<1x8xf32, #tpu.memory_space<vmem>>, vector<1x8xf32>,
    %c0_17 = arith.constant 0 : index
    %c0_18 = arith.constant 0 : index
    %33 = vector.load %arg5[%c0_17, %c0_18] : memref<1x36xf32, #tpu.memory_space<vmem>>, vector<1x36xf32>
    tpu.vector_store %arg5[%c0_17, %c0_18], %12 {strides = array<i32>} : memref<1x36xf32, #tpu.memory_space<vmem>>, vector<1x36xf32>,
    return
  }
}

module attributes {stable_mosaic.version = 11 : i64} {
  func.func @kernel(%arg0: i32, %arg1: i32, %arg2: memref<1x1xf32, #tpu.memory_space<smem>>, %arg3: memref<1x18x18x4xf32, #tpu.memory_space<vmem>>, %arg4: memref<8x36xf32, #tpu.memory_space<vmem>>, %arg5: memref<8x1xf32, #tpu.memory_space<vmem>>, %arg6: memref<1x8x128xf32, #tpu.memory_space<vmem>>) attributes {dimension_semantics = [#tpu.dimension_semantics<parallel>, #tpu.dimension_semantics<parallel>], iteration_bounds = array<i64: 2, 2>, scalar_prefetch = 0 : i64, scratch_operands = 0 : i64, tpu.core_type = #tpu.core_type<tc>, window_params = [{transform_indices = @transform_0, window_bounds = array<i64: 1, 1>}, {transform_indices = @transform_1, window_bounds = array<i64: 1, 18, 18, 4>}, {pipeline_mode = #tpu.pipeline_mode<synchronous>, transform_indices = @transform_2, window_bounds = array<i64: 8, 36>}, {pipeline_mode = #tpu.pipeline_mode<synchronous>, transform_indices = @transform_3, window_bounds = array<i64: 8, 1>}, {transform_indices = @transform_4, window_bounds = array<i64: 1, 8, 128>}]} {
    %c0 = arith.constant 0 : index
    %c0_0 = arith.constant 0 : index
    %0 = memref.load %arg2[%c0, %c0_0] : memref<1x1xf32, #tpu.memory_space<smem>>
    %c8_i32 = arith.constant 8 : i32
    %1 = arith.muli %arg1, %c8_i32 : i32
    %2 = tpu.assume_multiple %1, 8 : i32
    %c0_i32 = arith.constant 0 : i32
    %3 = arith.addi %2, %c0_i32 : i32
    %c0_1 = arith.constant 0 : index
    %4 = arith.index_cast %3 : i32 to index
    %c0_2 = arith.constant 0 : index
    %c0_3 = arith.constant 0 : index
    %5 = vector.load %arg3[%c0_1, %4, %c0_2, %c0_3] : memref<1x18x18x4xf32, #tpu.memory_space<vmem>>, vector<1x8x16x4xf32>
    %6 = vector.shape_cast %5 : vector<1x8x16x4xf32> to vector<8x16x4xf32>
    %7 = vector.shape_cast %6 : vector<8x16x4xf32> to vector<128x4xf32>
    %c0_i32_4 = arith.constant 0 : i32
    %8 = arith.addi %2, %c0_i32_4 : i32
    %c0_5 = arith.constant 0 : index
    %9 = arith.index_cast %8 : i32 to index
    %c1 = arith.constant 1 : index
    %c0_6 = arith.constant 0 : index
    %10 = vector.load %arg3[%c0_5, %9, %c1, %c0_6] : memref<1x18x18x4xf32, #tpu.memory_space<vmem>>, vector<1x8x16x4xf32>
    %11 = vector.shape_cast %10 : vector<1x8x16x4xf32> to vector<8x16x4xf32>
    %12 = vector.shape_cast %11 : vector<8x16x4xf32> to vector<128x4xf32>
    %c0_i32_7 = arith.constant 0 : i32
    %13 = arith.addi %2, %c0_i32_7 : i32
    %c0_8 = arith.constant 0 : index
    %14 = arith.index_cast %13 : i32 to index
    %c2 = arith.constant 2 : index
    %c0_9 = arith.constant 0 : index
    %15 = vector.load %arg3[%c0_8, %14, %c2, %c0_9] : memref<1x18x18x4xf32, #tpu.memory_space<vmem>>, vector<1x8x16x4xf32>
    %16 = vector.shape_cast %15 : vector<1x8x16x4xf32> to vector<8x16x4xf32>
    %17 = vector.shape_cast %16 : vector<8x16x4xf32> to vector<128x4xf32>
    %c1_i32 = arith.constant 1 : i32
    %18 = arith.addi %2, %c1_i32 : i32
    %c0_10 = arith.constant 0 : index
    %19 = arith.index_cast %18 : i32 to index
    %c0_11 = arith.constant 0 : index
    %c0_12 = arith.constant 0 : index
    %20 = vector.load %arg3[%c0_10, %19, %c0_11, %c0_12] : memref<1x18x18x4xf32, #tpu.memory_space<vmem>>, vector<1x8x16x4xf32>
    %21 = vector.shape_cast %20 : vector<1x8x16x4xf32> to vector<8x16x4xf32>
    %22 = vector.shape_cast %21 : vector<8x16x4xf32> to vector<128x4xf32>
    %c1_i32_13 = arith.constant 1 : i32
    %23 = arith.addi %2, %c1_i32_13 : i32
    %c0_14 = arith.constant 0 : index
    %24 = arith.index_cast %23 : i32 to index
    %c1_15 = arith.constant 1 : index
    %c0_16 = arith.constant 0 : index
    %25 = vector.load %arg3[%c0_14, %24, %c1_15, %c0_16] : memref<1x18x18x4xf32, #tpu.memory_space<vmem>>, vector<1x8x16x4xf32>
    %26 = vector.shape_cast %25 : vector<1x8x16x4xf32> to vector<8x16x4xf32>
    %27 = vector.shape_cast %26 : vector<8x16x4xf32> to vector<128x4xf32>
    %c1_i32_17 = arith.constant 1 : i32
    %28 = arith.addi %2, %c1_i32_17 : i32
    %c0_18 = arith.constant 0 : index
    %29 = arith.index_cast %28 : i32 to index
    %c2_19 = arith.constant 2 : index
    %c0_20 = arith.constant 0 : index
    %30 = vector.load %arg3[%c0_18, %29, %c2_19, %c0_20] : memref<1x18x18x4xf32, #tpu.memory_space<vmem>>, vector<1x8x16x4xf32>
    %31 = vector.shape_cast %30 : vector<1x8x16x4xf32> to vector<8x16x4xf32>
    %32 = vector.shape_cast %31 : vector<8x16x4xf32> to vector<128x4xf32>
    %c2_i32 = arith.constant 2 : i32
    %33 = arith.addi %2, %c2_i32 : i32
    %c0_21 = arith.constant 0 : index
    %34 = arith.index_cast %33 : i32 to index
    %c0_22 = arith.constant 0 : index
    %c0_23 = arith.constant 0 : index
    %35 = vector.load %arg3[%c0_21, %34, %c0_22, %c0_23] : memref<1x18x18x4xf32, #tpu.memory_space<vmem>>, vector<1x8x16x4xf32>
    %36 = vector.shape_cast %35 : vector<1x8x16x4xf32> to vector<8x16x4xf32>
    %37 = vector.shape_cast %36 : vector<8x16x4xf32> to vector<128x4xf32>
    %c2_i32_24 = arith.constant 2 : i32
    %38 = arith.addi %2, %c2_i32_24 : i32
    %c0_25 = arith.constant 0 : index
    %39 = arith.index_cast %38 : i32 to index
    %c1_26 = arith.constant 1 : index
    %c0_27 = arith.constant 0 : index
    %40 = vector.load %arg3[%c0_25, %39, %c1_26, %c0_27] : memref<1x18x18x4xf32, #tpu.memory_space<vmem>>, vector<1x8x16x4xf32>
    %41 = vector.shape_cast %40 : vector<1x8x16x4xf32> to vector<8x16x4xf32>
    %42 = vector.shape_cast %41 : vector<8x16x4xf32> to vector<128x4xf32>
    %c2_i32_28 = arith.constant 2 : i32
    %43 = arith.addi %2, %c2_i32_28 : i32
    %c0_29 = arith.constant 0 : index
    %44 = arith.index_cast %43 : i32 to index
    %c2_30 = arith.constant 2 : index
    %c0_31 = arith.constant 0 : index
    %45 = vector.load %arg3[%c0_29, %44, %c2_30, %c0_31] : memref<1x18x18x4xf32, #tpu.memory_space<vmem>>, vector<1x8x16x4xf32>
    %46 = vector.shape_cast %45 : vector<1x8x16x4xf32> to vector<8x16x4xf32>
    %47 = vector.shape_cast %46 : vector<8x16x4xf32> to vector<128x4xf32>
    %48 = tpu.concatenate %7, %12, %17, %22, %27, %32, %37, %42, %47 in 1 : vector<128x4xf32>, vector<128x4xf32>, vector<128x4xf32>, vector<128x4xf32>, vector<128x4xf32>, vector<128x4xf32>, vector<128x4xf32>, vector<128x4xf32>, vector<128x4xf32> -> vector<128x36xf32>
    %c0_32 = arith.constant 0 : index
    %c0_33 = arith.constant 0 : index
    %49 = vector.load %arg4[%c0_32, %c0_33] : memref<8x36xf32, #tpu.memory_space<vmem>>, vector<8x36xf32>
    %50 = vector.broadcast %0 : f32 to vector<8x36xf32>
    %51 = arith.mulf %49, %50 : vector<8x36xf32>
    %cst = arith.constant dense<0.000000e+00> : vector<8x128xf32>
    %52 = tpu.matmul %51, %48, %cst {dimension_numbers = #tpu.dot_dimension_numbers<[1], [1], [0], [0], [0, 0, 1, 0], [], []>} : vector<8x36xf32>, vector<128x36xf32>, vector<8x128xf32> -> vector<8x128xf32>
    %c0_34 = arith.constant 0 : index
    %c0_35 = arith.constant 0 : index
    %53 = vector.load %arg5[%c0_34, %c0_35] : memref<8x1xf32, #tpu.memory_space<vmem>>, vector<8x1xf32>
    %54 = vector.broadcast %53 : vector<8x1xf32> to vector<8x128xf32>
    %55 = arith.addf %52, %54 : vector<8x128xf32>
    %c0_36 = arith.constant 0 : index
    %c0_37 = arith.constant 0 : index
    %c0_38 = arith.constant 0 : index
    %56 = vector.load %arg6[%c0_36, %c0_37, %c0_38] : memref<1x8x128xf32, #tpu.memory_space<vmem>>, vector<1x8x128xf32>
    %57 = vector.shape_cast %56 : vector<1x8x128xf32> to vector<8x128xf32>
    %58 = vector.shape_cast %55 : vector<8x128xf32> to vector<1x8x128xf32>
    tpu.vector_store %arg6[%c0_36, %c0_37, %c0_38], %58 {strides = array<i32>} : memref<1x8x128xf32, #tpu.memory_space<vmem>>, vector<1x8x128xf32>,
    return
  }
  func.func @transform_0(%arg0: i32, %arg1: i32) -> (i32, i32) {
    %c0_i32 = arith.constant 0 : i32
    %c0_i32_0 = arith.constant 0 : i32
    %c0_i32_1 = arith.constant 0 : i32
    return %c0_i32, %c0_i32_0 : i32, i32
  }
  func.func @transform_1(%arg0: i32, %arg1: i32) -> (i32, i32, i32, i32) {
    %c0_i32 = arith.constant 0 : i32
    %c0_i32_0 = arith.constant 0 : i32
    %c0_i32_1 = arith.constant 0 : i32
    %c0_i32_2 = arith.constant 0 : i32
    return %arg0, %c0_i32, %c0_i32_0, %c0_i32_1 : i32, i32, i32, i32
  }
  func.func @transform_2(%arg0: i32, %arg1: i32) -> (i32, i32) {
    %c0_i32 = arith.constant 0 : i32
    %c0_i32_0 = arith.constant 0 : i32
    %c0_i32_1 = arith.constant 0 : i32
    return %c0_i32, %c0_i32_0 : i32, i32
  }
  func.func @transform_3(%arg0: i32, %arg1: i32) -> (i32, i32) {
    %c0_i32 = arith.constant 0 : i32
    %c0_i32_0 = arith.constant 0 : i32
    %c0_i32_1 = arith.constant 0 : i32
    return %c0_i32, %c0_i32_0 : i32, i32
  }
  func.func @transform_4(%arg0: i32, %arg1: i32) -> (i32, i32, i32) {
    %c0_i32 = arith.constant 0 : i32
    %c0_i32_0 = arith.constant 0 : i32
    return %arg0, %c0_i32, %arg1 : i32, i32, i32
  }
}

</mosaic_0001>

<llo_original>
// kernel: conv2d_spectral.2
$region0: #{conv2d_spectral.2}
  #allocation0 [shape = 'u32[]', space=smem, size = 0x4, offset = 0x4, fixed_abs, tag = 'smem constant byte address 0x4 - core index']
  #allocation1 [shape = 'u32[72,128]{1,0:T(1,128)}', space=vmem, size = 0x9000, scoped, tag = 'internal scratch']
  %s0 = inlined_call_operand.vmem [shape: f32[8,36], index: 0, kind: input, shape index: {}]
  %s1 = inlined_call_operand.vmem [shape: f32[1,8], index: 1, kind: input, shape index: {}]
  %s2 = inlined_call_operand.vmem [shape: f32[1,36], index: 2, kind: input, shape index: {}]
  %s3 = inlined_call_operand.hbm [shape: f32[1,1], index: 3, kind: output, shape index: {0}]
  %s4 = inlined_call_operand.hbm [shape: f32[1,8], index: 4, kind: output, shape index: {1}]
  %s5 = inlined_call_operand.hbm [shape: f32[1,36], index: 5, kind: output, shape index: {2}]
  %6 = xla_tuple %s3, %s4, %s5
  %s7 = sld [smem:[#allocation0]]
  $region38: #{conv2d_spectral.2} parent=0
    _
  %s9 = ssub.s32 1, %s7
  %s10 = scalar_select 0, %s9, %s7
  $region1: #{conv2d_spectral.2} parent=0
    #allocation2 [shape = 'u8[512]{0}', space=smem, size = 0x200, scoped, tag = 'output window, operand 0, single buffered']
    #allocation3 [shape = 's32[1]{0}', space=sflag, size = 0x4, scoped, tag = 'scoped memory for conv2d_spectral.2']
    #allocation4 [shape = 's32[1]{0}', space=sflag, size = 0x4, scoped, tag = 'scoped memory for conv2d_spectral.2']
    #allocation5 [shape = 'u8[512]{0}', space=vmem, size = 0x400, scoped, tag = 'output window, operand 1, single buffered']
    #allocation6 [shape = 'u8[512]{0}', space=vmem, size = 0x400, scoped, tag = 'output window, operand 2, single buffered']
    #allocation7 [shape = 's32[1]{0}', space=sflag, size = 0x4, scoped, tag = 'scoped memory for conv2d_spectral.2']
    %11 = vsyncpa [#allocation4], 0
    %12 = vsyncpa [#allocation3], 0
    %13 = vsyncpa [#allocation7], 0
    // Predicated region
    $region2: #{conv2d_spectral.2} parent=1 // pred_check
      _
    $region3: #{conv2d_spectral.2} parent=1 // pred_check_branch
      %15 = sbr.rel (0) target = $region5
    $region4: #{conv2d_spectral.2} parent=1 // pred_region
      _
    $region5: #{conv2d_spectral.2} parent=1 // pred_fallthru
      _
    // Predicated region
    $region6: #{conv2d_spectral.2} parent=1 // pred_check
      _
    $region7: #{conv2d_spectral.2} parent=1 // pred_check_branch
      %17 = sbr.rel (0) target = $region9
    $region8: #{conv2d_spectral.2} parent=1 // pred_region
      _
    $region9: #{conv2d_spectral.2} parent=1 // pred_fallthru
      _
    // Predicated region
    $region10: #{conv2d_spectral.2} parent=1 // pred_check
      _
    $region11: #{conv2d_spectral.2} parent=1 // pred_check_branch
      %19 = sbr.rel (0) target = $region13
    $region12: #{conv2d_spectral.2} parent=1 // pred_region
      _
    $region13: #{conv2d_spectral.2} parent=1 // pred_fallthru
      _
    %v20 = vld [vmem:[%s0] sm:$0xff]
    %v21 = vld [vmem:[%s1] sm:$0x1]
    %vm22 = vcmask 64512
    %v24 = vsel %vm22, %v21, 0
    %26 = vmatpush.msra.mxu0 0.0
    %27 = vmatpush.msra.mxu0 0.0
    %28 = vmatpush.msra.mxu0 0.0
    %29 = vmatpush.msra.mxu0 0.0
    %30 = vmatpush.msra.mxu0 0.0
    %31 = vmatpush.msra.mxu0 0.0
    %32 = vmatpush.msra.mxu0 0.0
    %33 = vmatpush.msra.mxu0 0.0
    %34 = vmatpush.msra.mxu0 0.0
    %35 = vmatpush.msra.mxu0 0.0
    %36 = vmatpush.msra.mxu0 0.0
    %37 = vmatpush.msra.mxu0 0.0
    %38 = vmatpush.msra.mxu0 0.0
    %39 = vmatpush.msra.mxu0 0.0
    %40 = vmatpush.msra.mxu0 0.0
    %41 = vmatpush.msra.mxu0 %v20
    %42 = vmatmul.f32.gmra.mxu0 %v24
    %v43 = vpop.f32.mrf.mxu0
    %v44 = vadd.f32 0.0, %v43
    %45 = vdwg.mxu0
    %v46 = vmul.f32 %v44, %v44
    %vm47 = vcmask 286720
    %v48 = vsel %vm47, %v46, 0.0
    %49 = vadd.xlane.f32.xlu0 %v48
    %v50 = vpop.xlane.xlu0 %49
    %v51 = vrot.slane %v50, 4
    %v52 = vadd.f32 %v50, %v51
    %v53 = vrot.slane %v52, 2
    %v54 = vadd.f32 %v52, %v53
    %v55 = vrot.slane %v54, 1
    %v56 = vadd.f32 %v54, %v55
    %s57 = vtos %v56
    %v58 = vstv %s57
    %v59 = vrsqrt.pop %v58
    %v60 = vmul.f32 %v59, %v58
    %v61 = vmul.f32 %v60, %v59
    %v62 = vmul.f32 0.5, %v61
    %v63 = vsub.f32 1.5, %v62
    %v64 = vmul.f32 %v59, %v63
    %v65 = vmul.f32 %v58, %v64
    %vm66 = vcmp.eq.f32.partialorder %v58, inf
    %v67 = vsel %vm66, %v58, %v65
    %vm68 = vcmp.eq.f32.partialorder %v58, 0.0
    %v69 = vand.u32 %v58, 2147483648
    %v70 = vsel %vm68, %v69, %v67
    %s71 = vtos %v70
    %s72 = sadd.f32 %s71, 1e-12
    %v73 = vstv %s72
    %v74 = vrcp.pop %v73
    %v75 = vmul.f32 %v73, %v74
    %v76 = vsub.f32 1.0, %v75
    %v77 = vmul.f32 %v74, %v76
    %v78 = vadd.f32 %v74, %v77
    %vm79 = vweird.f32 %v73
    %vm80 = vweird.f32 %v74
    %vm81 = vmor %vm79, %vm80
    %v82 = vsel %vm81, %v74, %v78
    %v83 = vand.u32 2147483647, %v73
    %vm84 = vcmp.eq.f32.partialorder %v83, 8.507059e+37
    %v85 = vand.u32 %v73, 2147483648
    %v86 = vor.u32 1.1754944e-38, %v85
    %v87 = vsel %vm84, %v86, %v82
    %s88 = vtos %v87
    %v89 = vstv %s88
    %v90 = vmul.f32 %v44, %v89
    %vm91 = vcmask 293888
    %v93 = vsel %vm91, %v90, 0
    %v96 = vsel %vm91, %v20, 0
    %98 = vmatpush.xpose.msra.mxu0 0.0
    %99 = vmatpush.xpose.msra.mxu0 0.0
    %100 = vmatpush.xpose.msra.mxu0 0.0
    %101 = vmatpush.xpose.msra.mxu0 0.0
    %102 = vmatpush.xpose.msra.mxu0 0.0
    %103 = vmatpush.xpose.msra.mxu0 0.0
    %104 = vmatpush.xpose.msra.mxu0 0.0
    %105 = vmatpush.xpose.msra.mxu0 0.0
    %106 = vmatpush.xpose.msra.mxu0 0.0
    %107 = vmatpush.xpose.msra.mxu0 0.0
    %108 = vmatpush.xpose.msra.mxu0 0.0
    %109 = vmatpush.xpose.msra.mxu0 0.0
    %110 = vmatpush.xpose.msra.mxu0 0.0
    %111 = vmatpush.xpose.msra.mxu0 0.0
    %112 = vmatpush.xpose.msra.mxu0 0.0
    %113 = vmatpush.xpose.msra.mxu0 %v96
    %114 = vmatmul.f32.gmra.mxu0 %v93
    %v115 = vpop.f32.mrf.mxu0
    %v116 = vadd.f32 0.0, %v115
    %117 = vdwg.mxu0
    %v118 = vmul.f32 %v116, %v116
    %vm119 = vcmask 57344
    %v120 = vsel %vm119, %v118, 0.0
    %121 = vadd.xlane.f32.xlu0 %v120
    %v122 = vpop.xlane.xlu0 %121
    %v123 = vrot.slane %v122, 4
    %v124 = vadd.f32 %v122, %v123
    %v125 = vrot.slane %v124, 2
    %v126 = vadd.f32 %v124, %v125
    %v127 = vrot.slane %v126, 1
    %v128 = vadd.f32 %v126, %v127
    %s129 = vtos %v128
    %v130 = vstv %s129
    %v131 = vrsqrt.pop %v130
    %v132 = vmul.f32 %v131, %v130
    %v133 = vmul.f32 %v132, %v131
    %v134 = vmul.f32 0.5, %v133
    %v135 = vsub.f32 1.5, %v134
    %v136 = vmul.f32 %v131, %v135
    %v137 = vmul.f32 %v130, %v136
    %vm138 = vcmp.eq.f32.partialorder %v130, inf
    %v139 = vsel %vm138, %v130, %v137
    %vm140 = vcmp.eq.f32.partialorder %v130, 0.0
    %v141 = vand.u32 %v130, 2147483648
    %v142 = vsel %vm140, %v141, %v139
    %s143 = vtos %v142
    %s144 = sadd.f32 %s143, 1e-12
    %v145 = vstv %s144
    %v146 = vrcp.pop %v145
    %v147 = vmul.f32 %v145, %v146
    %v148 = vsub.f32 1.0, %v147
    %v149 = vmul.f32 %v146, %v148
    %v150 = vadd.f32 %v146, %v149
    %vm151 = vweird.f32 %v145
    %vm152 = vweird.f32 %v146
    %vm153 = vmor %vm151, %vm152
    %v154 = vsel %vm153, %v146, %v150
    %v155 = vand.u32 2147483647, %v145
    %vm156 = vcmp.eq.f32.partialorder %v155, 8.507059e+37
    %v157 = vand.u32 %v145, 2147483648
    %v158 = vor.u32 1.1754944e-38, %v157
    %v159 = vsel %vm156, %v158, %v154
    %s160 = vtos %v159
    %v161 = vstv %s160
    %v162 = vmul.f32 %v116, %v161
    %v163 = vmul.f32 %v162, %v116
    %v164 = vsel %vm119, %v163, 0.0
    %165 = vadd.xlane.f32.xlu0 %v164
    %v166 = vpop.xlane.xlu0 %165
    %v167 = vrot.slane %v166, 4
    %v168 = vadd.f32 %v166, %v167
    %v169 = vrot.slane %v168, 2
    %v170 = vadd.f32 %v168, %v169
    %v171 = vrot.slane %v170, 1
    %v172 = vadd.f32 %v170, %v171
    %s173 = vtos %v172
    %v174 = vstv %s173
    %v175 = vrcp.pop %v174
    %v176 = vmul.f32 %v174, %v175
    %v177 = vsub.f32 1.0, %v176
    %v178 = vmul.f32 %v175, %v177
    %v179 = vadd.f32 %v175, %v178
    %vm180 = vweird.f32 %v174
    %vm181 = vweird.f32 %v175
    %vm182 = vmor %vm180, %vm181
    %v183 = vsel %vm182, %v175, %v179
    %v184 = vand.u32 2147483647, %v174
    %vm185 = vcmp.eq.f32.partialorder %v184, 8.507059e+37
    %v186 = vand.u32 %v174, 2147483648
    %v187 = vor.u32 1.1754944e-38, %v186
    %v188 = vsel %vm185, %v187, %v183
    %s189 = vtos %v188
    %s190 = scalar_lea.smem [#allocation2], 0
    %191 = sst [smem:[%s190]] %s189
    %192 = vst.msk [vmem:[#allocation5] sm:$0x1] %vm119, %v162
    %193 = vst.msk [vmem:[#allocation6] sm:$0x1] %vm47, %v90
    // Predicated region
    $region14: #{conv2d_spectral.2} parent=1 // pred_check
      _
    $region15: #{conv2d_spectral.2} parent=1 // pred_check_branch
      %195 = sbr.rel (0) target = $region17
    $region16: #{conv2d_spectral.2} parent=1 // pred_region
      %197 = vsyncadd [#allocation4], 0
      %s199 = sshll.u32 %s3, 4
      %s200 = int_to_ptr.hbm [resolvable:$true] %s199
      %202 = dma.smem_to_hbm [#allocation2], 16, %s200, [#allocation4]
    $region17: #{conv2d_spectral.2} parent=1 // pred_fallthru
      _
    // Predicated region
    $region18: #{conv2d_spectral.2} parent=1 // pred_check
      _
    $region19: #{conv2d_spectral.2} parent=1 // pred_check_branch
      %204 = sbr.rel (0) target = $region21
    $region20: #{conv2d_spectral.2} parent=1 // pred_region
      %206 = vsyncadd [#allocation3], 0
      %s208 = sshll.u32 [#allocation5], 4
      %s209 = int_to_ptr.vmem [resolvable:$true] %s208
      %s210 = sshll.u32 %s4, 4
      %s211 = int_to_ptr.hbm [resolvable:$true] %s210
      %213 = dma.vmem_to_hbm [thread:$0]  %s209, 16, %s211, [#allocation3]
    $region21: #{conv2d_spectral.2} parent=1 // pred_fallthru
      _
    // Predicated region
    $region22: #{conv2d_spectral.2} parent=1 // pred_check
      _
    $region23: #{conv2d_spectral.2} parent=1 // pred_check_branch
      %215 = sbr.rel (0) target = $region25
    $region24: #{conv2d_spectral.2} parent=1 // pred_region
      %217 = vsyncadd [#allocation7], 0
      %s219 = sshll.u32 [#allocation6], 4
      %s220 = int_to_ptr.vmem [resolvable:$true] %s219
      %s221 = sshll.u32 %s5, 4
      %s222 = int_to_ptr.hbm [resolvable:$true] %s221
      %224 = dma.vmem_to_hbm [thread:$0]  %s220, 16, %s222, [#allocation7]
    $region25: #{conv2d_spectral.2} parent=1 // pred_fallthru
      _
    // Predicated region
    $region26: #{conv2d_spectral.2} parent=1 // pred_check
      _
    $region27: #{conv2d_spectral.2} parent=1 // pred_check_branch
      %226 = sbr.rel (0) target = $region29
    $region28: #{conv2d_spectral.2} parent=1 // pred_region
      %228 = dma.done [#allocation4], 16
    $region29: #{conv2d_spectral.2} parent=1 // pred_fallthru
      _
    // Predicated region
    $region30: #{conv2d_spectral.2} parent=1 // pred_check
      _
    $region31: #{conv2d_spectral.2} parent=1 // pred_check_branch
      %230 = sbr.rel (0) target = $region33
    $region32: #{conv2d_spectral.2} parent=1 // pred_region
      %232 = dma.done [#allocation3], 16
    $region33: #{conv2d_spectral.2} parent=1 // pred_fallthru
      _
    // Predicated region
    $region34: #{conv2d_spectral.2} parent=1 // pred_check
      _
    $region35: #{conv2d_spectral.2} parent=1 // pred_check_branch
      %234 = sbr.rel (0) target = $region37
    $region36: #{conv2d_spectral.2} parent=1 // pred_region
      %236 = dma.done [#allocation7], 16
    $region37: #{conv2d_spectral.2} parent=1 // pred_fallthru
      _
    %237 = sfence
    %238 = vsyncpa [#allocation3], 1
    %239 = vsyncpa [#allocation7], 1
    %240 = vsyncpa [#allocation4], 1

// kernel: conv2d_spectral.3
$region0: #{conv2d_spectral.3}
  #allocation0 [shape = 'u32[]', space=smem, size = 0x4, offset = 0x4, fixed_abs, tag = 'smem constant byte address 0x4 - core index']
  #allocation1 [shape = 'u32[72,128]{1,0:T(1,128)}', space=vmem, size = 0x9000, scoped, tag = 'internal scratch']
  #allocation2 [shape = 'f32[1,1]{1,0:T(1,128)S(6)}', space=smem, size = 0x200, scoped, tag = 'scoped memory for conv2d_spectral.3']
  %s0 = inlined_call_operand.<no memory space> [shape: f32[1,1], index: 0, kind: input, shape index: {}]
  %s1 = inlined_call_operand.vmem [shape: f32[2,18,18,4], index: 1, kind: input, shape index: {}]
  %s2 = inlined_call_operand.vmem [shape: f32[8,36], index: 2, kind: input, shape index: {}]
  %s3 = inlined_call_operand.vmem [shape: f32[8,1], index: 3, kind: input, shape index: {}]
  %s4 = inlined_call_operand.vmem [shape: f32[2,8,256], index: 4, kind: output, shape index: {}]
  %s5 = sld [smem:[#allocation0]]
  $region49: #{conv2d_spectral.3} parent=0
    _
  %s7 = ssub.s32 1, %s5
  %s8 = scalar_select 0, %s7, %s5
  %9 = sst [smem:[#allocation2]] %s0
  loop: start=0, step=1, limit=6
  $region2: #{conv2d_spectral.3} parent=0 // loop_pre_header
    _
  $region3: #{conv2d_spectral.3} parent=0 // loop_header
    %s11 = sphi 0, %s15
    %p12 = scmp.ge.s32.totalorder %s11, 6
    %s18 = sphi 0, %s30
    %s19 = sphi 0, %s26
    %s20 = sphi 0, %s18
    %s21 = sphi 0, %s19
    %s22 = sphi 0, %s20
    %s23 = sphi 0, %s21
    %s31 = sphi 0, %s31
    %s33 = sphi 0, %s31
    %s34 = sphi 0, %s33
    %s48 = sphi 0, %s34
    %s54 = sphi 0, %s56
    %s57 = sphi 0, %s54
    %s58 = sphi 0, %s57
    %s74 = sphi 0, %s58
    %s78 = sphi 0, %s78
    %s80 = sphi 0, %s78
    %s81 = sphi 0, %s80
    %s95 = sphi 0, %s81
    %s99 = sphi 0, %s99
    %s101 = sphi 0, %s99
    %s102 = sphi 0, %s101
    %s116 = sphi 0, %s102
    %s124 = sphi 0, %s126
    %s127 = sphi 0, %s124
    %s128 = sphi 0, %s127
    %s144 = sphi 0, %s128
  $region4: #{conv2d_spectral.3} parent=0 // loop_header_branch
    %14 = sbr.rel (%p12) target = $region8
  $region5: #{conv2d_spectral.3} parent=0 // loop_body
    %s16 = ssub.s32 %s11, 1
    %s17 = ssub.s32 %s11, 2
    %s24 = sadd.s32 1, %s19
    %p25 = scmp.ge.s32.totalorder %s24, 2
    %s26 = scalar_select %p25, 0, %s24
    %s27 = sadd.s32 1, %s18
    %s28 = scalar_select %p25, %s27, %s18
    %p29 = scmp.ge.s32.totalorder %s28, 2
    %s30 = scalar_select %p29, 0, %s28
    %s32 = sadd.s32 %s31, 1
    %p35 = scmp.eq.s32.totalorder %s11, 3
    %p36 = scmp.ne.s32.totalorder %s31, %s33
    %p37 = scmp.eq.s32.totalorder %s11, 0
    %p38 = por %p36, %p37
    %p39 = scmp.ne.s32.totalorder %s31, %s33
    %p40 = scmp.eq.s32.totalorder %s16, 3
    %p41 = por %p39, %p40
    %p42 = scmp.ne.s32.totalorder %s33, %s34
    %p43 = scmp.eq.s32.totalorder %s16, 0
    %p44 = por %p42, %p43
    %p45 = scmp.ne.s32.totalorder %s33, %s34
    %p46 = scmp.eq.s32.totalorder %s17, 3
    %p47 = por %p45, %p46
    %p49 = scmp.ne.s32.totalorder %s34, %s48
    %p50 = scmp.eq.s32.totalorder %s17, 0
    %p51 = por %p49, %p50
    %s52 = ssub.s32 %s18, %s30
    %p53 = scmp.eq.s32.totalorder %s52, 0
    %s55 = sadd.s32 %s54, 1
    %s56 = scalar_select %p53, %s54, %s55
    %p59 = pneg %p53
    %p60 = scmp.eq.s32.totalorder %s11, 3
    %p61 = por %p59, %p60
    %p62 = scmp.ne.s32.totalorder %s54, %s57
    %p63 = scmp.eq.s32.totalorder %s11, 0
    %p64 = por %p62, %p63
    %p65 = scmp.ne.s32.totalorder %s54, %s57
    %p66 = scmp.eq.s32.totalorder %s16, 3
    %p67 = por %p65, %p66
    %p68 = scmp.ne.s32.totalorder %s57, %s58
    %p69 = scmp.eq.s32.totalorder %s16, 0
    %p70 = por %p68, %p69
    %p71 = scmp.ne.s32.totalorder %s57, %s58
    %p72 = scmp.eq.s32.totalorder %s17, 3
    %p73 = por %p71, %p72
    %p75 = scmp.ne.s32.totalorder %s58, %s74
    %p76 = scmp.eq.s32.totalorder %s17, 0
    %p77 = por %p75, %p76
    %s79 = sadd.s32 %s78, 1
    %p82 = scmp.eq.s32.totalorder %s11, 3
    %p83 = scmp.ne.s32.totalorder %s78, %s80
    %p84 = scmp.eq.s32.totalorder %s11, 0
    %p85 = por %p83, %p84
    %p86 = scmp.ne.s32.totalorder %s78, %s80
    %p87 = scmp.eq.s32.totalorder %s16, 3
    %p88 = por %p86, %p87
    %p89 = scmp.ne.s32.totalorder %s80, %s81
    %p90 = scmp.eq.s32.totalorder %s16, 0
    %p91 = por %p89, %p90
    %p92 = scmp.ne.s32.totalorder %s80, %s81
    %p93 = scmp.eq.s32.totalorder %s17, 3
    %p94 = por %p92, %p93
    %p96 = scmp.ne.s32.totalorder %s81, %s95
    %p97 = scmp.eq.s32.totalorder %s17, 0
    %p98 = por %p96, %p97
    %s100 = sadd.s32 %s99, 1
    %p103 = scmp.eq.s32.totalorder %s11, 3
    %p104 = scmp.ne.s32.totalorder %s99, %s101
    %p105 = scmp.eq.s32.totalorder %s11, 0
    %p106 = por %p104, %p105
    %p107 = scmp.ne.s32.totalorder %s99, %s101
    %p108 = scmp.eq.s32.totalorder %s16, 3
    %p109 = por %p107, %p108
    %p110 = scmp.ne.s32.totalorder %s101, %s102
    %p111 = scmp.eq.s32.totalorder %s16, 0
    %p112 = por %p110, %p111
    %p113 = scmp.ne.s32.totalorder %s101, %s102
    %p114 = scmp.eq.s32.totalorder %s17, 3
    %p115 = por %p113, %p114
    %p117 = scmp.ne.s32.totalorder %s102, %s116
    %p118 = scmp.eq.s32.totalorder %s17, 0
    %p119 = por %p117, %p118
    %s120 = ssub.s32 %s18, %s30
    %s121 = ssub.s32 %s19, %s26
    %s122 = sor.u32 %s120, %s121
    %p123 = scmp.eq.s32.totalorder %s122, 0
    %s125 = sadd.s32 %s124, 1
    %s126 = scalar_select %p123, %s124, %s125
    %p129 = pneg %p123
    %p130 = scmp.eq.s32.totalorder %s11, 3
    %p131 = por %p129, %p130
    %p132 = scmp.ne.s32.totalorder %s124, %s127
    %p133 = scmp.eq.s32.totalorder %s11, 0
    %p134 = por %p132, %p133
    %p135 = scmp.ne.s32.totalorder %s124, %s127
    %p136 = scmp.eq.s32.totalorder %s16, 3
    %p137 = por %p135, %p136
    %p138 = scmp.ne.s32.totalorder %s127, %s128
    %p139 = scmp.eq.s32.totalorder %s16, 0
    %p140 = por %p138, %p139
    %p141 = scmp.ne.s32.totalorder %s127, %s128
    %p142 = scmp.eq.s32.totalorder %s17, 3
    %p143 = por %p141, %p142
    %p145 = scmp.ne.s32.totalorder %s128, %s144
    %p146 = scmp.eq.s32.totalorder %s17, 0
    %p147 = por %p145, %p146
    %p148 = scmp.le.s32.totalorder 1, %s11
    %p149 = scmp.lt.s32.totalorder %s11, 5
    %p150 = pnand %p148, %p149
    %p151 = pneg %p150
    // Predicated region
    $region9: #{conv2d_spectral.3} parent=5 // pred_check
      _
    $region10: #{conv2d_spectral.3} parent=5 // pred_check_branch
      %153 = sbr.rel (%p150) target = $region12
    $region11: #{conv2d_spectral.3} parent=5 // pred_region
      %s154 = ssub.s32 %s11, 1
      // Predicated region
      $region13: #{conv2d_spectral.3} parent=11 // pred_check
        %p155 = pneg %p44
      $region14: #{conv2d_spectral.3} parent=11 // pred_check_branch
        %157 = sbr.rel (%p155) target = $region16
      $region15: #{conv2d_spectral.3} parent=11 // pred_region
        _
      $region16: #{conv2d_spectral.3} parent=11 // pred_fallthru
        _
      // Predicated region
      $region17: #{conv2d_spectral.3} parent=11 // pred_check
        %p158 = pneg %p91
      $region18: #{conv2d_spectral.3} parent=11 // pred_check_branch
        %160 = sbr.rel (%p158) target = $region20
      $region19: #{conv2d_spectral.3} parent=11 // pred_region
        _
      $region20: #{conv2d_spectral.3} parent=11 // pred_fallthru
        _
      // Predicated region
      $region21: #{conv2d_spectral.3} parent=11 // pred_check
        %p161 = pneg %p112
      $region22: #{conv2d_spectral.3} parent=11 // pred_check_branch
        %163 = sbr.rel (%p161) target = $region24
      $region23: #{conv2d_spectral.3} parent=11 // pred_region
        _
      $region24: #{conv2d_spectral.3} parent=11 // pred_fallthru
        _
    $region12: #{conv2d_spectral.3} parent=5 // pred_fallthru
      _
    %p164 = scmp.lt.s32.totalorder %s11, 4
    // Predicated region
    $region25: #{conv2d_spectral.3} parent=5 // pred_check
      %p165 = pneg %p164
    $region26: #{conv2d_spectral.3} parent=5 // pred_check_branch
      %167 = sbr.rel (%p165) target = $region28
    $region27: #{conv2d_spectral.3} parent=5 // pred_region
      // Predicated region
      $region29: #{conv2d_spectral.3} parent=27 // pred_check
        %p168 = pneg %p64
      $region30: #{conv2d_spectral.3} parent=27 // pred_check_branch
        %170 = sbr.rel (%p168) target = $region32
      $region31: #{conv2d_spectral.3} parent=27 // pred_region
        %p171 = scmp.lt.s32.totalorder %s18, 1
        %s172 = scalar_select %p171, %s18, 1
        %s173 = smul.addr %s172, 54
        %s174 = smul.addr %s173, 8
        %s175 = scalar_lea.vmem %s1, %s174
      $region32: #{conv2d_spectral.3} parent=27 // pred_fallthru
        _
    $region28: #{conv2d_spectral.3} parent=5 // pred_fallthru
      _
    %p176 = scmp.le.s32.totalorder 1, %s11
    %p177 = scmp.lt.s32.totalorder %s11, 5
    %p178 = pnand %p176, %p177
    %p179 = pneg %p178
    // Predicated region
    $region33: #{conv2d_spectral.3} parent=5 // pred_check
      _
    $region34: #{conv2d_spectral.3} parent=5 // pred_check_branch
      %181 = sbr.rel (%p178) target = $region36
    $region35: #{conv2d_spectral.3} parent=5 // pred_region
      %s182 = ssub.s32 %s11, 1
      %p183 = pneg %p44
      %p184 = pneg %p41
      %p185 = scmp.lt.s32.totalorder %s20, 1
      %s186 = scalar_select %p185, %s20, 1
      %s187 = smul.addr %s186, 54
      %s188 = smul.addr %s187, 8
      %s189 = scalar_lea.vmem %s1, %s188
      %p190 = pneg %p70
      %p191 = pneg %p67
      %p192 = pneg %p91
      %p193 = pneg %p88
      %p194 = pneg %p112
      %p195 = pneg %p109
      %p196 = pneg %p140
      %p197 = pneg %p137
      %p198 = scmp.lt.s32.totalorder %s20, 1
      %s199 = scalar_select %p198, %s20, 1
      %p200 = scmp.lt.s32.totalorder %s21, 1
      %s201 = scalar_select %p200, %s21, 1
      %s202 = smul.addr %s199, 2
      %s203 = sadd.s32 %s201, %s202
      %s204 = smul.addr %s203, 8
      %s205 = scalar_lea.vmem %s4, %s204
      %p206 = scmp.lt.s32.totalorder %s20, 1
      %s207 = scalar_select %p206, %s20, 1
      %s208 = smul.addr %s207, 54
      %s209 = smul.addr %s208, 8
      %s210 = scalar_lea.vmem %s1, %s209
      %p211 = scmp.lt.s32.totalorder %s20, 1
      %s212 = scalar_select %p211, %s20, 1
      %p213 = scmp.lt.s32.totalorder %s21, 1
      %s214 = scalar_select %p213, %s21, 1
      %s215 = smul.addr %s212, 2
      %s216 = sadd.s32 %s214, %s215
      %s217 = smul.addr %s216, 8
      %s218 = scalar_lea.vmem %s4, %s217
      %s219 = sld [smem:[#allocation2]]
      %s220 = smul.u32 %s21, 8
      %s221 = smul.u32 %s220, 24
      %s222 = scalar_lea.vmem %s210, %s221
      %v223 = vld [vmem:[%s222] sm:$0xff]
      %v224 = vld [vmem:[%s222 + $0x8] sm:$0xff]
      %v225 = vld [vmem:[%s222 + $0x18] sm:$0xff]
      %v226 = vld [vmem:[%s222 + $0x20] sm:$0xff]
      %v227 = vld [vmem:[%s222 + $0x30] sm:$0xff]
      %v228 = vld [vmem:[%s222 + $0x38] sm:$0xff]
      %v229 = vld [vmem:[%s222 + $0x48] sm:$0xff]
      %v230 = vld [vmem:[%s222 + $0x50] sm:$0xff]
      %v231 = vld [vmem:[%s222 + $0x60] sm:$0xff]
      %v232 = vld [vmem:[%s222 + $0x68] sm:$0xff]
      %v233 = vld [vmem:[%s222 + $0x78] sm:$0xff]
      %v234 = vld [vmem:[%s222 + $0x80] sm:$0xff]
      %v235 = vld [vmem:[%s222 + $0x90] sm:$0xff]
      %v236 = vld [vmem:[%s222 + $0x98] sm:$0xff]
      %v237 = vld [vmem:[%s222 + $0xa8] sm:$0xff]
      %v238 = vld [vmem:[%s222 + $0xb0] sm:$0xff]
      %v239 = vld [vmem:[%s222 + $0x1] sm:$0xff]
      %v240 = vld [vmem:[%s222 + $0x9] sm:$0xff]
      %v241 = vld [vmem:[%s222 + $0x19] sm:$0xff]
      %v242 = vld [vmem:[%s222 + $0x21] sm:$0xff]
      %v243 = vld [vmem:[%s222 + $0x31] sm:$0xff]
      %v244 = vld [vmem:[%s222 + $0x39] sm:$0xff]
      %v245 = vld [vmem:[%s222 + $0x49] sm:$0xff]
      %v246 = vld [vmem:[%s222 + $0x51] sm:$0xff]
      %v247 = vld [vmem:[%s222 + $0x61] sm:$0xff]
      %v248 = vld [vmem:[%s222 + $0x69] sm:$0xff]
      %v249 = vld [vmem:[%s222 + $0x79] sm:$0xff]
      %v250 = vld [vmem:[%s222 + $0x81] sm:$0xff]
      %v251 = vld [vmem:[%s222 + $0x91] sm:$0xff]
      %v252 = vld [vmem:[%s222 + $0x99] sm:$0xff]
      %v253 = vld [vmem:[%s222 + $0xa9] sm:$0xff]
      %v254 = vld [vmem:[%s222 + $0xb1] sm:$0xff]
      %v255 = vld [vmem:[%s222 + $0x2] sm:$0xff]
      %v256 = vld [vmem:[%s222 + $0xa] sm:$0xff]
      %v257 = vld [vmem:[%s222 + $0x1a] sm:$0xff]
      %v258 = vld [vmem:[%s222 + $0x22] sm:$0xff]
      %v259 = vld [vmem:[%s222 + $0x32] sm:$0xff]
      %v260 = vld [vmem:[%s222 + $0x3a] sm:$0xff]
      %v261 = vld [vmem:[%s222 + $0x4a] sm:$0xff]
      %v262 = vld [vmem:[%s222 + $0x52] sm:$0xff]
      %v263 = vld [vmem:[%s222 + $0x62] sm:$0xff]
      %v264 = vld [vmem:[%s222 + $0x6a] sm:$0xff]
      %v265 = vld [vmem:[%s222 + $0x7a] sm:$0xff]
      %v266 = vld [vmem:[%s222 + $0x82] sm:$0xff]
      %v267 = vld [vmem:[%s222 + $0x92] sm:$0xff]
      %v268 = vld [vmem:[%s222 + $0x9a] sm:$0xff]
      %v269 = vld [vmem:[%s222 + $0xaa] sm:$0xff]
      %v270 = vld [vmem:[%s222 + $0xb2] sm:$0xff]
      %s271 = sadd.s32 %s220, 1
      %s272 = smul.u32 %s271, 24
      %s273 = scalar_lea.vmem %s210, %s272
      %v274 = vld [vmem:[%s273] sm:$0xff]
      %v275 = vld [vmem:[%s273 + $0x8] sm:$0xff]
      %v276 = vld [vmem:[%s273 + $0x18] sm:$0xff]
      %v277 = vld [vmem:[%s273 + $0x20] sm:$0xff]
      %v278 = vld [vmem:[%s273 + $0x30] sm:$0xff]
      %v279 = vld [vmem:[%s273 + $0x38] sm:$0xff]
      %v280 = vld [vmem:[%s273 + $0x48] sm:$0xff]
      %v281 = vld [vmem:[%s273 + $0x50] sm:$0xff]
      %v282 = vld [vmem:[%s273 + $0x60] sm:$0xff]
      %v283 = vld [vmem:[%s273 + $0x68] sm:$0xff]
      %v284 = vld [vmem:[%s273 + $0x78] sm:$0xff]
      %v285 = vld [vmem:[%s273 + $0x80] sm:$0xff]
      %v286 = vld [vmem:[%s273 + $0x90] sm:$0xff]
      %v287 = vld [vmem:[%s273 + $0x98] sm:$0xff]
      %v288 = vld [vmem:[%s273 + $0xa8] sm:$0xff]
      %v289 = vld [vmem:[%s273 + $0xb0] sm:$0xff]
      %v290 = vld [vmem:[%s273 + $0x1] sm:$0xff]
      %v291 = vld [vmem:[%s273 + $0x9] sm:$0xff]
      %v292 = vld [vmem:[%s273 + $0x19] sm:$0xff]
      %v293 = vld [vmem:[%s273 + $0x21] sm:$0xff]
      %v294 = vld [vmem:[%s273 + $0x31] sm:$0xff]
      %v295 = vld [vmem:[%s273 + $0x39] sm:$0xff]
      %v296 = vld [vmem:[%s273 + $0x49] sm:$0xff]
      %v297 = vld [vmem:[%s273 + $0x51] sm:$0xff]
      %v298 = vld [vmem:[%s273 + $0x61] sm:$0xff]
      %v299 = vld [vmem:[%s273 + $0x69] sm:$0xff]
      %v300 = vld [vmem:[%s273 + $0x79] sm:$0xff]
      %v301 = vld [vmem:[%s273 + $0x81] sm:$0xff]
      %v302 = vld [vmem:[%s273 + $0x91] sm:$0xff]
      %v303 = vld [vmem:[%s273 + $0x99] sm:$0xff]
      %v304 = vld [vmem:[%s273 + $0xa9] sm:$0xff]
      %v305 = vld [vmem:[%s273 + $0xb1] sm:$0xff]
      %v306 = vld [vmem:[%s273 + $0x2] sm:$0xff]
      %v307 = vld [vmem:[%s273 + $0xa] sm:$0xff]
      %v308 = vld [vmem:[%s273 + $0x1a] sm:$0xff]
      %v309 = vld [vmem:[%s273 + $0x22] sm:$0xff]
      %v310 = vld [vmem:[%s273 + $0x32] sm:$0xff]
      %v311 = vld [vmem:[%s273 + $0x3a] sm:$0xff]
      %v312 = vld [vmem:[%s273 + $0x4a] sm:$0xff]
      %v313 = vld [vmem:[%s273 + $0x52] sm:$0xff]
      %v314 = vld [vmem:[%s273 + $0x62] sm:$0xff]
      %v315 = vld [vmem:[%s273 + $0x6a] sm:$0xff]
      %v316 = vld [vmem:[%s273 + $0x7a] sm:$0xff]
      %v317 = vld [vmem:[%s273 + $0x82] sm:$0xff]
      %v318 = vld [vmem:[%s273 + $0x92] sm:$0xff]
      %v319 = vld [vmem:[%s273 + $0x9a] sm:$0xff]
      %v320 = vld [vmem:[%s273 + $0xaa] sm:$0xff]
      %v321 = vld [vmem:[%s273 + $0xb2] sm:$0xff]
      %s322 = sadd.s32 %s220, 2
      %s323 = smul.u32 %s322, 24
      %s324 = scalar_lea.vmem %s210, %s323
      %v325 = vld [vmem:[%s324] sm:$0xff]
      %v326 = vld [vmem:[%s324 + $0x8] sm:$0xff]
      %v327 = vld [vmem:[%s324 + $0x18] sm:$0xff]
      %v328 = vld [vmem:[%s324 + $0x20] sm:$0xff]
      %v329 = vld [vmem:[%s324 + $0x30] sm:$0xff]
      %v330 = vld [vmem:[%s324 + $0x38] sm:$0xff]
      %v331 = vld [vmem:[%s324 + $0x48] sm:$0xff]
      %v332 = vld [vmem:[%s324 + $0x50] sm:$0xff]
      %v333 = vld [vmem:[%s324 + $0x60] sm:$0xff]
      %v334 = vld [vmem:[%s324 + $0x68] sm:$0xff]
      %v335 = vld [vmem:[%s324 + $0x78] sm:$0xff]
      %v336 = vld [vmem:[%s324 + $0x80] sm:$0xff]
      %v337 = vld [vmem:[%s324 + $0x90] sm:$0xff]
      %v338 = vld [vmem:[%s324 + $0x98] sm:$0xff]
      %v339 = vld [vmem:[%s324 + $0xa8] sm:$0xff]
      %v340 = vld [vmem:[%s324 + $0xb0] sm:$0xff]
      %v341 = vld [vmem:[%s324 + $0x1] sm:$0xff]
      %v342 = vld [vmem:[%s324 + $0x9] sm:$0xff]
      %v343 = vld [vmem:[%s324 + $0x19] sm:$0xff]
      %v344 = vld [vmem:[%s324 + $0x21] sm:$0xff]
      %v345 = vld [vmem:[%s324 + $0x31] sm:$0xff]
      %v346 = vld [vmem:[%s324 + $0x39] sm:$0xff]
      %v347 = vld [vmem:[%s324 + $0x49] sm:$0xff]
      %v348 = vld [vmem:[%s324 + $0x51] sm:$0xff]
      %v349 = vld [vmem:[%s324 + $0x61] sm:$0xff]
      %v350 = vld [vmem:[%s324 + $0x69] sm:$0xff]
      %v351 = vld [vmem:[%s324 + $0x79] sm:$0xff]
      %v352 = vld [vmem:[%s324 + $0x81] sm:$0xff]
      %v353 = vld [vmem:[%s324 + $0x91] sm:$0xff]
      %v354 = vld [vmem:[%s324 + $0x99] sm:$0xff]
      %v355 = vld [vmem:[%s324 + $0xa9] sm:$0xff]
      %v356 = vld [vmem:[%s324 + $0xb1] sm:$0xff]
      %v357 = vld [vmem:[%s324 + $0x2] sm:$0xff]
      %v358 = vld [vmem:[%s324 + $0xa] sm:$0xff]
      %v359 = vld [vmem:[%s324 + $0x1a] sm:$0xff]
      %v360 = vld [vmem:[%s324 + $0x22] sm:$0xff]
      %v361 = vld [vmem:[%s324 + $0x32] sm:$0xff]
      %v362 = vld [vmem:[%s324 + $0x3a] sm:$0xff]
      %v363 = vld [vmem:[%s324 + $0x4a] sm:$0xff]
      %v364 = vld [vmem:[%s324 + $0x52] sm:$0xff]
      %v365 = vld [vmem:[%s324 + $0x62] sm:$0xff]
      %v366 = vld [vmem:[%s324 + $0x6a] sm:$0xff]
      %v367 = vld [vmem:[%s324 + $0x7a] sm:$0xff]
      %v368 = vld [vmem:[%s324 + $0x82] sm:$0xff]
      %v369 = vld [vmem:[%s324 + $0x92] sm:$0xff]
      %v370 = vld [vmem:[%s324 + $0x9a] sm:$0xff]
      %v371 = vld [vmem:[%s324 + $0xaa] sm:$0xff]
      %v372 = vld [vmem:[%s324 + $0xb2] sm:$0xff]
      %389 = vrot.lane.b32.xlu0 %v239, 4
      %v390 = vpop.permute.xlu0 %389
      %391 = vrot.lane.b32.xlu0 %v240, 4
      %v392 = vpop.permute.xlu0 %391
      %393 = vrot.lane.b32.xlu0 %v241, 4
      %v394 = vpop.permute.xlu0 %393
      %395 = vrot.lane.b32.xlu0 %v242, 4
      %v396 = vpop.permute.xlu0 %395
      %397 = vrot.lane.b32.xlu0 %v243, 4
      %v398 = vpop.permute.xlu0 %397
      %399 = vrot.lane.b32.xlu0 %v244, 4
      %v400 = vpop.permute.xlu0 %399
      %401 = vrot.lane.b32.xlu0 %v245, 4
      %v402 = vpop.permute.xlu0 %401
      %403 = vrot.lane.b32.xlu0 %v246, 4
      %v404 = vpop.permute.xlu0 %403
      %405 = vrot.lane.b32.xlu0 %v247, 4
      %v406 = vpop.permute.xlu0 %405
      %407 = vrot.lane.b32.xlu0 %v248, 4
      %v408 = vpop.permute.xlu0 %407
      %409 = vrot.lane.b32.xlu0 %v249, 4
      %v410 = vpop.permute.xlu0 %409
      %411 = vrot.lane.b32.xlu0 %v250, 4
      %v412 = vpop.permute.xlu0 %411
      %413 = vrot.lane.b32.xlu0 %v251, 4
      %v414 = vpop.permute.xlu0 %413
      %415 = vrot.lane.b32.xlu0 %v252, 4
      %v416 = vpop.permute.xlu0 %415
      %417 = vrot.lane.b32.xlu0 %v253, 4
      %v418 = vpop.permute.xlu0 %417
      %419 = vrot.lane.b32.xlu0 %v254, 4
      %v420 = vpop.permute.xlu0 %419
      %453 = vrot.lane.b32.xlu0 %v255, 8
      %v454 = vpop.permute.xlu0 %453
      %455 = vrot.lane.b32.xlu0 %v256, 8
      %v456 = vpop.permute.xlu0 %455
      %457 = vrot.lane.b32.xlu0 %v257, 8
      %v458 = vpop.permute.xlu0 %457
      %459 = vrot.lane.b32.xlu0 %v258, 8
      %v460 = vpop.permute.xlu0 %459
      %461 = vrot.lane.b32.xlu0 %v259, 8
      %v462 = vpop.permute.xlu0 %461
      %463 = vrot.lane.b32.xlu0 %v260, 8
      %v464 = vpop.permute.xlu0 %463
      %465 = vrot.lane.b32.xlu0 %v261, 8
      %v466 = vpop.permute.xlu0 %465
      %467 = vrot.lane.b32.xlu0 %v262, 8
      %v468 = vpop.permute.xlu0 %467
      %469 = vrot.lane.b32.xlu0 %v263, 8
      %v470 = vpop.permute.xlu0 %469
      %471 = vrot.lane.b32.xlu0 %v264, 8
      %v472 = vpop.permute.xlu0 %471
      %473 = vrot.lane.b32.xlu0 %v265, 8
      %v474 = vpop.permute.xlu0 %473
      %475 = vrot.lane.b32.xlu0 %v266, 8
      %v476 = vpop.permute.xlu0 %475
      %477 = vrot.lane.b32.xlu0 %v267, 8
      %v478 = vpop.permute.xlu0 %477
      %479 = vrot.lane.b32.xlu0 %v268, 8
      %v480 = vpop.permute.xlu0 %479
      %481 = vrot.lane.b32.xlu0 %v269, 8
      %v482 = vpop.permute.xlu0 %481
      %483 = vrot.lane.b32.xlu0 %v270, 8
      %v484 = vpop.permute.xlu0 %483
      %517 = vrot.lane.b32.xlu0 %v274, 12
      %v518 = vpop.permute.xlu0 %517
      %519 = vrot.lane.b32.xlu0 %v275, 12
      %v520 = vpop.permute.xlu0 %519
      %521 = vrot.lane.b32.xlu0 %v276, 12
      %v522 = vpop.permute.xlu0 %521
      %523 = vrot.lane.b32.xlu0 %v277, 12
      %v524 = vpop.permute.xlu0 %523
      %525 = vrot.lane.b32.xlu0 %v278, 12
      %v526 = vpop.permute.xlu0 %525
      %527 = vrot.lane.b32.xlu0 %v279, 12
      %v528 = vpop.permute.xlu0 %527
      %529 = vrot.lane.b32.xlu0 %v280, 12
      %v530 = vpop.permute.xlu0 %529
      %531 = vrot.lane.b32.xlu0 %v281, 12
      %v532 = vpop.permute.xlu0 %531
      %533 = vrot.lane.b32.xlu0 %v282, 12
      %v534 = vpop.permute.xlu0 %533
      %535 = vrot.lane.b32.xlu0 %v283, 12
      %v536 = vpop.permute.xlu0 %535
      %537 = vrot.lane.b32.xlu0 %v284, 12
      %v538 = vpop.permute.xlu0 %537
      %539 = vrot.lane.b32.xlu0 %v285, 12
      %v540 = vpop.permute.xlu0 %539
      %541 = vrot.lane.b32.xlu0 %v286, 12
      %v542 = vpop.permute.xlu0 %541
      %543 = vrot.lane.b32.xlu0 %v287, 12
      %v544 = vpop.permute.xlu0 %543
      %545 = vrot.lane.b32.xlu0 %v288, 12
      %v546 = vpop.permute.xlu0 %545
      %547 = vrot.lane.b32.xlu0 %v289, 12
      %v548 = vpop.permute.xlu0 %547
      %581 = vrot.lane.b32.xlu0 %v290, 16
      %v582 = vpop.permute.xlu0 %581
      %583 = vrot.lane.b32.xlu0 %v291, 16
      %v584 = vpop.permute.xlu0 %583
      %585 = vrot.lane.b32.xlu0 %v292, 16
      %v586 = vpop.permute.xlu0 %585
      %587 = vrot.lane.b32.xlu0 %v293, 16
      %v588 = vpop.permute.xlu0 %587
      %589 = vrot.lane.b32.xlu0 %v294, 16
      %v590 = vpop.permute.xlu0 %589
      %591 = vrot.lane.b32.xlu0 %v295, 16
      %v592 = vpop.permute.xlu0 %591
      %593 = vrot.lane.b32.xlu0 %v296, 16
      %v594 = vpop.permute.xlu0 %593
      %595 = vrot.lane.b32.xlu0 %v297, 16
      %v596 = vpop.permute.xlu0 %595
      %597 = vrot.lane.b32.xlu0 %v298, 16
      %v598 = vpop.permute.xlu0 %597
      %599 = vrot.lane.b32.xlu0 %v299, 16
      %v600 = vpop.permute.xlu0 %599
      %601 = vrot.lane.b32.xlu0 %v300, 16
      %v602 = vpop.permute.xlu0 %601
      %603 = vrot.lane.b32.xlu0 %v301, 16
      %v604 = vpop.permute.xlu0 %603
      %605 = vrot.lane.b32.xlu0 %v302, 16
      %v606 = vpop.permute.xlu0 %605
      %607 = vrot.lane.b32.xlu0 %v303, 16
      %v608 = vpop.permute.xlu0 %607
      %609 = vrot.lane.b32.xlu0 %v304, 16
      %v610 = vpop.permute.xlu0 %609
      %611 = vrot.lane.b32.xlu0 %v305, 16
      %v612 = vpop.permute.xlu0 %611
      %645 = vrot.lane.b32.xlu0 %v306, 20
      %v646 = vpop.permute.xlu0 %645
      %647 = vrot.lane.b32.xlu0 %v307, 20
      %v648 = vpop.permute.xlu0 %647
      %649 = vrot.lane.b32.xlu0 %v308, 20
      %v650 = vpop.permute.xlu0 %649
      %651 = vrot.lane.b32.xlu0 %v309, 20
      %v652 = vpop.permute.xlu0 %651
      %653 = vrot.lane.b32.xlu0 %v310, 20
      %v654 = vpop.permute.xlu0 %653
      %655 = vrot.lane.b32.xlu0 %v311, 20
      %v656 = vpop.permute.xlu0 %655
      %657 = vrot.lane.b32.xlu0 %v312, 20
      %v658 = vpop.permute.xlu0 %657
      %659 = vrot.lane.b32.xlu0 %v313, 20
      %v660 = vpop.permute.xlu0 %659
      %661 = vrot.lane.b32.xlu0 %v314, 20
      %v662 = vpop.permute.xlu0 %661
      %663 = vrot.lane.b32.xlu0 %v315, 20
      %v664 = vpop.permute.xlu0 %663
      %665 = vrot.lane.b32.xlu0 %v316, 20
      %v666 = vpop.permute.xlu0 %665
      %667 = vrot.lane.b32.xlu0 %v317, 20
      %v668 = vpop.permute.xlu0 %667
      %669 = vrot.lane.b32.xlu0 %v318, 20
      %v670 = vpop.permute.xlu0 %669
      %671 = vrot.lane.b32.xlu0 %v319, 20
      %v672 = vpop.permute.xlu0 %671
      %673 = vrot.lane.b32.xlu0 %v320, 20
      %v674 = vpop.permute.xlu0 %673
      %675 = vrot.lane.b32.xlu0 %v321, 20
      %v676 = vpop.permute.xlu0 %675
      %709 = vrot.lane.b32.xlu0 %v325, 24
      %v710 = vpop.permute.xlu0 %709
      %711 = vrot.lane.b32.xlu0 %v326, 24
      %v712 = vpop.permute.xlu0 %711
      %713 = vrot.lane.b32.xlu0 %v327, 24
      %v714 = vpop.permute.xlu0 %713
      %715 = vrot.lane.b32.xlu0 %v328, 24
      %v716 = vpop.permute.xlu0 %715
      %717 = vrot.lane.b32.xlu0 %v329, 24
      %v718 = vpop.permute.xlu0 %717
      %719 = vrot.lane.b32.xlu0 %v330, 24
      %v720 = vpop.permute.xlu0 %719
      %721 = vrot.lane.b32.xlu0 %v331, 24
      %v722 = vpop.permute.xlu0 %721
      %723 = vrot.lane.b32.xlu0 %v332, 24
      %v724 = vpop.permute.xlu0 %723
      %725 = vrot.lane.b32.xlu0 %v333, 24
      %v726 = vpop.permute.xlu0 %725
      %727 = vrot.lane.b32.xlu0 %v334, 24
      %v728 = vpop.permute.xlu0 %727
      %729 = vrot.lane.b32.xlu0 %v335, 24
      %v730 = vpop.permute.xlu0 %729
      %731 = vrot.lane.b32.xlu0 %v336, 24
      %v732 = vpop.permute.xlu0 %731
      %733 = vrot.lane.b32.xlu0 %v337, 24
      %v734 = vpop.permute.xlu0 %733
      %735 = vrot.lane.b32.xlu0 %v338, 24
      %v736 = vpop.permute.xlu0 %735
      %737 = vrot.lane.b32.xlu0 %v339, 24
      %v738 = vpop.permute.xlu0 %737
      %739 = vrot.lane.b32.xlu0 %v340, 24
      %v740 = vpop.permute.xlu0 %739
      %773 = vrot.lane.b32.xlu0 %v341, 28
      %v774 = vpop.permute.xlu0 %773
      %775 = vrot.lane.b32.xlu0 %v342, 28
      %v776 = vpop.permute.xlu0 %775
      %777 = vrot.lane.b32.xlu0 %v343, 28
      %v778 = vpop.permute.xlu0 %777
      %779 = vrot.lane.b32.xlu0 %v344, 28
      %v780 = vpop.permute.xlu0 %779
      %781 = vrot.lane.b32.xlu0 %v345, 28
      %v782 = vpop.permute.xlu0 %781
      %783 = vrot.lane.b32.xlu0 %v346, 28
      %v784 = vpop.permute.xlu0 %783
      %785 = vrot.lane.b32.xlu0 %v347, 28
      %v786 = vpop.permute.xlu0 %785
      %787 = vrot.lane.b32.xlu0 %v348, 28
      %v788 = vpop.permute.xlu0 %787
      %789 = vrot.lane.b32.xlu0 %v349, 28
      %v790 = vpop.permute.xlu0 %789
      %791 = vrot.lane.b32.xlu0 %v350, 28
      %v792 = vpop.permute.xlu0 %791
      %793 = vrot.lane.b32.xlu0 %v351, 28
      %v794 = vpop.permute.xlu0 %793
      %795 = vrot.lane.b32.xlu0 %v352, 28
      %v796 = vpop.permute.xlu0 %795
      %797 = vrot.lane.b32.xlu0 %v353, 28
      %v798 = vpop.permute.xlu0 %797
      %799 = vrot.lane.b32.xlu0 %v354, 28
      %v800 = vpop.permute.xlu0 %799
      %801 = vrot.lane.b32.xlu0 %v355, 28
      %v802 = vpop.permute.xlu0 %801
      %803 = vrot.lane.b32.xlu0 %v356, 28
      %v804 = vpop.permute.xlu0 %803
      %837 = vrot.lane.b32.xlu0 %v357, 32
      %v838 = vpop.permute.xlu0 %837
      %839 = vrot.lane.b32.xlu0 %v358, 32
      %v840 = vpop.permute.xlu0 %839
      %841 = vrot.lane.b32.xlu0 %v359, 32
      %v842 = vpop.permute.xlu0 %841
      %843 = vrot.lane.b32.xlu0 %v360, 32
      %v844 = vpop.permute.xlu0 %843
      %845 = vrot.lane.b32.xlu0 %v361, 32
      %v846 = vpop.permute.xlu0 %845
      %847 = vrot.lane.b32.xlu0 %v362, 32
      %v848 = vpop.permute.xlu0 %847
      %849 = vrot.lane.b32.xlu0 %v363, 32
      %v850 = vpop.permute.xlu0 %849
      %851 = vrot.lane.b32.xlu0 %v364, 32
      %v852 = vpop.permute.xlu0 %851
      %853 = vrot.lane.b32.xlu0 %v365, 32
      %v854 = vpop.permute.xlu0 %853
      %855 = vrot.lane.b32.xlu0 %v366, 32
      %v856 = vpop.permute.xlu0 %855
      %857 = vrot.lane.b32.xlu0 %v367, 32
      %v858 = vpop.permute.xlu0 %857
      %859 = vrot.lane.b32.xlu0 %v368, 32
      %v860 = vpop.permute.xlu0 %859
      %861 = vrot.lane.b32.xlu0 %v369, 32
      %v862 = vpop.permute.xlu0 %861
      %863 = vrot.lane.b32.xlu0 %v370, 32
      %v864 = vpop.permute.xlu0 %863
      %865 = vrot.lane.b32.xlu0 %v371, 32
      %v866 = vpop.permute.xlu0 %865
      %867 = vrot.lane.b32.xlu0 %v372, 32
      %v868 = vpop.permute.xlu0 %867
      %vm885 = vcmask 31744
      %v886 = vsel %vm885, %v223, %v390
      %v887 = vsel %vm885, %v224, %v392
      %v888 = vsel %vm885, %v225, %v394
      %v889 = vsel %vm885, %v226, %v396
      %v890 = vsel %vm885, %v227, %v398
      %v891 = vsel %vm885, %v228, %v400
      %v892 = vsel %vm885, %v229, %v402
      %v893 = vsel %vm885, %v230, %v404
      %v894 = vsel %vm885, %v231, %v406
      %v895 = vsel %vm885, %v232, %v408
      %v896 = vsel %vm885, %v233, %v410
      %v897 = vsel %vm885, %v234, %v412
      %v898 = vsel %vm885, %v235, %v414
      %v899 = vsel %vm885, %v236, %v416
      %v900 = vsel %vm885, %v237, %v418
      %v901 = vsel %vm885, %v238, %v420
      %vm902 = vcmask 64512
      %v903 = vsel %vm902, %v886, %v454
      %v904 = vsel %vm902, %v887, %v456
      %v905 = vsel %vm902, %v888, %v458
      %v906 = vsel %vm902, %v889, %v460
      %v907 = vsel %vm902, %v890, %v462
      %v908 = vsel %vm902, %v891, %v464
      %v909 = vsel %vm902, %v892, %v466
      %v910 = vsel %vm902, %v893, %v468
      %v911 = vsel %vm902, %v894, %v470
      %v912 = vsel %vm902, %v895, %v472
      %v913 = vsel %vm902, %v896, %v474
      %v914 = vsel %vm902, %v897, %v476
      %v915 = vsel %vm902, %v898, %v478
      %v916 = vsel %vm902, %v899, %v480
      %v917 = vsel %vm902, %v900, %v482
      %v918 = vsel %vm902, %v901, %v484
      %vm919 = vcmask 97280
      %v920 = vsel %vm919, %v903, %v518
      %v921 = vsel %vm919, %v904, %v520
      %v922 = vsel %vm919, %v905, %v522
      %v923 = vsel %vm919, %v906, %v524
      %v924 = vsel %vm919, %v907, %v526
      %v925 = vsel %vm919, %v908, %v528
      %v926 = vsel %vm919, %v909, %v530
      %v927 = vsel %vm919, %v910, %v532
      %v928 = vsel %vm919, %v911, %v534
      %v929 = vsel %vm919, %v912, %v536
      %v930 = vsel %vm919, %v913, %v538
      %v931 = vsel %vm919, %v914, %v540
      %v932 = vsel %vm919, %v915, %v542
      %v933 = vsel %vm919, %v916, %v544
      %v934 = vsel %vm919, %v917, %v546
      %v935 = vsel %vm919, %v918, %v548
      %vm936 = vcmask 130048
      %v937 = vsel %vm936, %v920, %v582
      %v938 = vsel %vm936, %v921, %v584
      %v939 = vsel %vm936, %v922, %v586
      %v940 = vsel %vm936, %v923, %v588
      %v941 = vsel %vm936, %v924, %v590
      %v942 = vsel %vm936, %v925, %v592
      %v943 = vsel %vm936, %v926, %v594
      %v944 = vsel %vm936, %v927, %v596
      %v945 = vsel %vm936, %v928, %v598
      %v946 = vsel %vm936, %v929, %v600
      %v947 = vsel %vm936, %v930, %v602
      %v948 = vsel %vm936, %v931, %v604
      %v949 = vsel %vm936, %v932, %v606
      %v950 = vsel %vm936, %v933, %v608
      %v951 = vsel %vm936, %v934, %v610
      %v952 = vsel %vm936, %v935, %v612
      %vm953 = vcmask 162816
      %v954 = vsel %vm953, %v937, %v646
      %v955 = vsel %vm953, %v938, %v648
      %v956 = vsel %vm953, %v939, %v650
      %v957 = vsel %vm953, %v940, %v652
      %v958 = vsel %vm953, %v941, %v654
      %v959 = vsel %vm953, %v942, %v656
      %v960 = vsel %vm953, %v943, %v658
      %v961 = vsel %vm953, %v944, %v660
      %v962 = vsel %vm953, %v945, %v662
      %v963 = vsel %vm953, %v946, %v664
      %v964 = vsel %vm953, %v947, %v666
      %v965 = vsel %vm953, %v948, %v668
      %v966 = vsel %vm953, %v949, %v670
      %v967 = vsel %vm953, %v950, %v672
      %v968 = vsel %vm953, %v951, %v674
      %v969 = vsel %vm953, %v952, %v676
      %vm970 = vcmask 195584
      %v971 = vsel %vm970, %v954, %v710
      %v972 = vsel %vm970, %v955, %v712
      %v973 = vsel %vm970, %v956, %v714
      %v974 = vsel %vm970, %v957, %v716
      %v975 = vsel %vm970, %v958, %v718
      %v976 = vsel %vm970, %v959, %v720
      %v977 = vsel %vm970, %v960, %v722
      %v978 = vsel %vm970, %v961, %v724
      %v979 = vsel %vm970, %v962, %v726
      %v980 = vsel %vm970, %v963, %v728
      %v981 = vsel %vm970, %v964, %v730
      %v982 = vsel %vm970, %v965, %v732
      %v983 = vsel %vm970, %v966, %v734
      %v984 = vsel %vm970, %v967, %v736
      %v985 = vsel %vm970, %v968, %v738
      %v986 = vsel %vm970, %v969, %v740
      %vm987 = vcmask 228352
      %v988 = vsel %vm987, %v971, %v774
      %v989 = vsel %vm987, %v972, %v776
      %v990 = vsel %vm987, %v973, %v778
      %v991 = vsel %vm987, %v974, %v780
      %v992 = vsel %vm987, %v975, %v782
      %v993 = vsel %vm987, %v976, %v784
      %v994 = vsel %vm987, %v977, %v786
      %v995 = vsel %vm987, %v978, %v788
      %v996 = vsel %vm987, %v979, %v790
      %v997 = vsel %vm987, %v980, %v792
      %v998 = vsel %vm987, %v981, %v794
      %v999 = vsel %vm987, %v982, %v796
      %v1000 = vsel %vm987, %v983, %v798
      %v1001 = vsel %vm987, %v984, %v800
      %v1002 = vsel %vm987, %v985, %v802
      %v1003 = vsel %vm987, %v986, %v804
      %vm1004 = vcmask 261120
      %v1005 = vsel %vm1004, %v988, %v838
      %v1006 = vsel %vm1004, %v989, %v840
      %v1007 = vsel %vm1004, %v990, %v842
      %v1008 = vsel %vm1004, %v991, %v844
      %v1009 = vsel %vm1004, %v992, %v846
      %v1010 = vsel %vm1004, %v993, %v848
      %v1011 = vsel %vm1004, %v994, %v850
      %v1012 = vsel %vm1004, %v995, %v852
      %v1013 = vsel %vm1004, %v996, %v854
      %v1014 = vsel %vm1004, %v997, %v856
      %v1015 = vsel %vm1004, %v998, %v858
      %v1016 = vsel %vm1004, %v999, %v860
      %v1017 = vsel %vm1004, %v1000, %v862
      %v1018 = vsel %vm1004, %v1001, %v864
      %v1019 = vsel %vm1004, %v1002, %v866
      %v1020 = vsel %vm1004, %v1003, %v868
      %v1021 = vld [vmem:[%s2] sm:$0xff]
      %v1022 = vstv %s219
      %v1023 = vmul.f32 %v1021, %v1022
      %v1024 = vld [vmem:[%s3] sm:$0xff]
      %1026 = vset.pattern.permute.xlu0 0
      %1027 = vperm.xlu0 %1026, %v1024
      %v1028 = vpop.permute.xlu0 %1027
      %vm1030 = vcmask 293888
      %v1032 = vsel %vm1030, %v1023, 0
      %v1035 = vsel %vm1030, %v1005, 0
      %v1038 = vsel %vm1030, %v1006, 0
      %v1041 = vsel %vm1030, %v1007, 0
      %v1044 = vsel %vm1030, %v1008, 0
      %v1047 = vsel %vm1030, %v1009, 0
      %v1050 = vsel %vm1030, %v1010, 0
      %v1053 = vsel %vm1030, %v1011, 0
      %v1056 = vsel %vm1030, %v1012, 0
      %v1059 = vsel %vm1030, %v1013, 0
      %v1062 = vsel %vm1030, %v1014, 0
      %v1065 = vsel %vm1030, %v1015, 0
      %v1068 = vsel %vm1030, %v1016, 0
      %v1071 = vsel %vm1030, %v1017, 0
      %v1074 = vsel %vm1030, %v1018, 0
      %v1077 = vsel %vm1030, %v1019, 0
      %v1080 = vsel %vm1030, %v1020, 0
      %1082 = vmatpush.xpose.msra.mxu0 %v1080
      %1083 = vmatpush.xpose.msra.mxu0 %v1077
      %1084 = vmatpush.xpose.msra.mxu0 %v1074
      %1085 = vmatpush.xpose.msra.mxu0 %v1071
      %1086 = vmatpush.xpose.msra.mxu0 %v1068
      %1087 = vmatpush.xpose.msra.mxu0 %v1065
      %1088 = vmatpush.xpose.msra.mxu0 %v1062
      %1089 = vmatpush.xpose.msra.mxu0 %v1059
      %1090 = vmatpush.xpose.msra.mxu0 %v1056
      %1091 = vmatpush.xpose.msra.mxu0 %v1053
      %1092 = vmatpush.xpose.msra.mxu0 %v1050
      %1093 = vmatpush.xpose.msra.mxu0 %v1047
      %1094 = vmatpush.xpose.msra.mxu0 %v1044
      %1095 = vmatpush.xpose.msra.mxu0 %v1041
      %1096 = vmatpush.xpose.msra.mxu0 %v1038
      %1097 = vmatpush.xpose.msra.mxu0 %v1035
      %1098 = vmatmul.f32.gmra.mxu0 %v1032
      %v1099 = vpop.f32.mrf.mxu0
      %v1100 = vadd.f32 %v1028, %v1099
      %1101 = vdwg.mxu0
      %1102 = vst [vmem:[%s218] sm:$0xff] %v1100
      %p1103 = scmp.lt.s32.totalorder %s20, 1
      %s1104 = scalar_select %p1103, %s20, 1
      %p1105 = scmp.lt.s32.totalorder %s21, 1
      %s1106 = scalar_select %p1105, %s21, 1
      %s1107 = smul.addr %s1104, 2
      %s1108 = sadd.s32 %s1106, %s1107
      %s1109 = smul.addr %s1108, 8
      %s1110 = scalar_lea.vmem %s4, %s1109
      // Predicated region
      $region37: #{conv2d_spectral.3} parent=35 // pred_check
        %p1111 = pneg %p137
      $region38: #{conv2d_spectral.3} parent=35 // pred_check_branch
        %1113 = sbr.rel (%p1111) target = $region40
      $region39: #{conv2d_spectral.3} parent=35 // pred_region
        _
      $region40: #{conv2d_spectral.3} parent=35 // pred_fallthru
        _
    $region36: #{conv2d_spectral.3} parent=5 // pred_fallthru
      _
    %p1114 = scmp.le.s32.totalorder 2, %s11
    // Predicated region
    $region41: #{conv2d_spectral.3} parent=5 // pred_check
      %p1115 = pneg %p1114
    $region42: #{conv2d_spectral.3} parent=5 // pred_check_branch
      %1117 = sbr.rel (%p1115) target = $region44
    $region43: #{conv2d_spectral.3} parent=5 // pred_region
      %s1118 = ssub.s32 %s11, 2
      // Predicated region
      $region45: #{conv2d_spectral.3} parent=43 // pred_check
        %p1119 = pneg %p143
      $region46: #{conv2d_spectral.3} parent=43 // pred_check_branch
        %1121 = sbr.rel (%p1119) target = $region48
      $region47: #{conv2d_spectral.3} parent=43 // pred_region
        %p1122 = scmp.lt.s32.totalorder %s22, 1
        %s1123 = scalar_select %p1122, %s22, 1
        %p1124 = scmp.lt.s32.totalorder %s23, 1
        %s1125 = scalar_select %p1124, %s23, 1
        %s1126 = smul.addr %s1123, 2
        %s1127 = sadd.s32 %s1125, %s1126
        %s1128 = smul.addr %s1127, 8
        %s1129 = scalar_lea.vmem %s4, %s1128
      $region48: #{conv2d_spectral.3} parent=43 // pred_fallthru
        _
    $region44: #{conv2d_spectral.3} parent=5 // pred_fallthru
      _
  $region6: #{conv2d_spectral.3} parent=0 // loop_footer
    %s15 = sadd.s32 1, %s11
  $region7: #{conv2d_spectral.3} parent=0 // loop_footer_branch
    %10 = sbr.rel target = $region3
  $region8: #{conv2d_spectral.3} parent=0 // loop_exit
    _

</llo_original>
